<compile_context>
chip_gen: v7x
topology: tpu7x:2x2x1
jax: 0.10.0
libtpu: 0.0.40
codegen_flags: <defaults>
</compile_context>

<pallas_src>
import functools
import math

import jax
import jax.numpy as jnp
from jax.experimental import pallas as pl
from jax.experimental.pallas import tpu as pltpu


def _head_kernel(*refs, H, W, Cin, Co, L, NB):
    """Fused regressor head for NB batch images.

    refs (L > 0):  x(NB,H,W*Cin) bf16 | wh(L,3K,W*Cin) bf16 | bh(L,1,W*Cin) f32
                   | whd(3K,W*Co) bf16 | bhd(1,W*Co) f32 | o(NB,H,W*Co) f32
    refs (L == 0): x | whd | bhd | o
    with K = (W+2)*Cin and 3K = the fused (dy,dx,cin) contraction length.
    """
    if L > 0:
        x_ref, wh_ref, bh_ref, whd_ref, bhd_ref, o_ref = refs
    else:
        x_ref, whd_ref, bhd_ref, o_ref = refs
        wh_ref = bh_ref = None

    K = (W + 2) * Cin
    M = NB * H

    # Halos are explicit zeros re-attached every layer (bf16, cheap concats).
    zrow = jnp.zeros((NB, 1, K), jnp.bfloat16)
    zcol = jnp.zeros((NB, H, Cin), jnp.bfloat16)

    def pad_halo(a):  # (NB, H, W*Cin) bf16 -> (NB, H+2, (W+2)*Cin) bf16
        a = jnp.concatenate([zcol, a, zcol], axis=2)
        return jnp.concatenate([zrow, a, zrow], axis=1)

    def fused_lhs(cur):  # (NB, H+2, K) -> (NB*H, 3K): dy taps folded onto lanes
        return jnp.concatenate(
            [cur[:, 0:H, :], cur[:, 1:H + 1, :], cur[:, 2:H + 2, :]],
            axis=2).reshape(M, 3 * K)

    cur = pad_halo(x_ref[...])

    for l in range(L):
        # Bias folded into the f32 accumulator init; ONE MXU dot per layer.
        acc = jnp.broadcast_to(bh_ref[l], (M, W * Cin))
        acc = acc + jnp.dot(fused_lhs(cur), wh_ref[l],
                            preferred_element_type=jnp.float32)
        act = jnp.maximum(acc, 0.0).astype(jnp.bfloat16)  # single bf16 cast
        cur = pad_halo(act.reshape(NB, H, W * Cin))

    # Header conv (no ReLU); lane-dense f32 output (NB, H, W*Co).
    acc = jnp.broadcast_to(bhd_ref[...], (M, W * Co))
    acc = acc + jnp.dot(fused_lhs(cur), whd_ref[...],
                        preferred_element_type=jnp.float32)
    o_ref[...] = acc.reshape(NB, H, W * Co).astype(o_ref.dtype)


def _fused_band(w_hwio, W):
    """Fold a 3x3 conv weight into one fused banded matmul weight.

    w_hwio: (3, 3, Cin, Cout)  ->  (3*(W+2)*Cin, W*Cout)
    Row index = dy*(W+2)*Cin + padded_input_pixel*Cin + cin;
    col index = out_pixel*Cout + cout.  Output columns are un-padded
    (pad_out=False); the next layer re-attaches the halo in-kernel.
    """
    _, _, Cin, Cout = w_hwio.shape
    eye = jnp.eye(W, dtype=w_hwio.dtype)
    bands = []
    for dy in range(3):
        band = jnp.zeros(((W + 2) * Cin, W * Cout), w_hwio.dtype)
        for dx in range(3):
            blk = jnp.einsum("pq,io->piqo", eye, w_hwio[dy, dx])
            blk = blk.reshape(W * Cin, W * Cout)
            band = band + jnp.pad(blk, ((dx * Cin, (2 - dx) * Cin), (0, 0)))
        bands.append(band)
    return jnp.concatenate(bands, axis=0)


@functools.partial(jax.jit, static_argnames=("num_anchors",))
def regressor_head_forward(params, x_nchw, num_anchors):
    """Matches Regressor_Head.forward: (N,C,H,W) -> (N, H*W*num_anchors, 4)."""
    N, C, H, W = x_nchw.shape
    L = len(params["layers"])
    Co = num_anchors * 4
    K = (W + 2) * C

    # Batch images per grid step so the MXU M dimension is ~128 rows.
    NB = max(1, min(N, -(-128 // H)))
    Np = -(-N // NB) * NB                      # batch padded to multiple of NB

    # NCHW -> NHWC -> (N, H, W*C) bf16 (lane axis = W*C, lane dense, half DMA).
    x = jnp.transpose(x_nchw, (0, 2, 3, 1)).reshape(N, H, W * C)
    x = x.astype(jnp.bfloat16)
    if Np != N:
        x = jnp.pad(x, ((0, Np - N), (0, 0), (0, 0)))

    # Fused banded weights / tiled biases (tiny glue arrays, built once).
    if L > 0:
        wh = jnp.stack([_fused_band(w, W) for (w, _) in params["layers"]])
        wh = wh.astype(jnp.bfloat16)                         # (L, 3K, W*C)
        bh = jnp.stack([jnp.tile(b, W) for (_, b) in params["layers"]])
        bh = bh[:, None, :].astype(jnp.float32)              # (L, 1, W*C)
    w_hd, b_hd = params["header"]
    whd = _fused_band(w_hd, W).astype(jnp.bfloat16)          # (3K, W*Co)
    bhd = jnp.tile(b_hd, W)[None, :].astype(jnp.float32)     # (1, W*Co)

    kernel = functools.partial(_head_kernel, H=H, W=W, Cin=C, Co=Co, L=L, NB=NB)

    in_specs = [pl.BlockSpec((NB, H, W * C), lambda n: (n, 0, 0))]
    inputs = [x]
    if L > 0:
        # Constant index maps -> weights stay VMEM resident across grid steps.
        # TODO(synk): pipeline_mode=pl.Buffered(1) here on v7x for large W*C.
        in_specs += [
            pl.BlockSpec((L, 3 * K, W * C), lambda n: (0, 0, 0)),
            pl.BlockSpec((L, 1, W * C), lambda n: (0, 0, 0)),
        ]
        inputs += [wh, bh]
    in_specs += [
        pl.BlockSpec((3 * K, W * Co), lambda n: (0, 0)),
        pl.BlockSpec((1, W * Co), lambda n: (0, 0)),
    ]
    inputs += [whd, bhd]

    # Cost estimate + VMEM limit derived from the actual footprint.
    flops = 2 * Np * H * 3 * K * (L * W * C + W * Co)
    bytes_accessed = (Np * H * W * C * 2                      # x (bf16)
                      + L * 3 * K * W * C * 2 + L * W * C * 4  # hidden w/b
                      + 3 * K * W * Co * 2 + W * Co * 4        # header w/b
                      + Np * H * W * Co * 4)                   # output (f32)
    weight_vmem = (L * 3 * K * W * C + 3 * K * W * Co) * 2 + (L * W * C + W * Co) * 4
    io_vmem = 2 * (NB * H * W * C * 2 + NB * H * W * Co * 4)   # double-buffered
    act_vmem = 6 * NB * (H + 2) * 3 * K * 4                    # in-kernel values
    vmem_limit = int(min(64 * 2 ** 20,
                         max(32 * 2 ** 20, 2 * (weight_vmem + io_vmem + act_vmem))))

    out = pl.pallas_call(
        kernel,
        out_shape=jax.ShapeDtypeStruct((Np, H, W * Co), jnp.float32),
        grid_spec=pltpu.PrefetchScalarGridSpec(
            num_scalar_prefetch=0,
            grid=(Np // NB,),
            in_specs=in_specs,
            out_specs=pl.BlockSpec((NB, H, W * Co), lambda n: (n, 0, 0)),
        ),
        compiler_params=pltpu.CompilerParams(
            dimension_semantics=("parallel",),
            vmem_limit_bytes=vmem_limit,
        ),
        cost_estimate=pl.CostEstimate(
            flops=flops, transcendentals=0, bytes_accessed=bytes_accessed),
    )(*inputs)

    if Np != N:
        out = out[:N]
    # (N, H, W*Co) flattened row-major == PyTorch permute(0,2,3,1).view(N,-1,4).
    return out.reshape(N, H * W * num_anchors, 4)


def regressor_head_reference(params, x_nchw, num_anchors):
    """Full-f32 pure-JAX reference (validates real parity, not self-consistency)."""
    x = jnp.transpose(x_nchw, (0, 2, 3, 1)).astype(jnp.float32)

    def conv(x, w_hwio, b, relu):
        y = jax.lax.conv_general_dilated(
            x, w_hwio.astype(jnp.float32),
            window_strides=(1, 1), padding="SAME",
            dimension_numbers=("NHWC", "HWIO", "NHWC"),
            preferred_element_type=jnp.float32,
            precision=jax.lax.Precision.HIGHEST)
        y = y + b
        return jnp.maximum(y, 0.0) if relu else y

    for (w, b) in params["layers"]:
        x = conv(x, w, b, relu=True)
    w, b = params["header"]
    x = conv(x, w, b, relu=False)
    N, H, W, _ = x.shape
    return x.reshape(N, H * W * num_anchors, 4)


def init_regressor_head_params(key, in_channels, num_anchors, num_layers):
    """Synthetic params with HWIO conv weights (3, 3, Cin, Cout).

    A real PyTorch checkpoint stores (Cout, Cin, 3, 3); convert with
    w.transpose(2, 3, 1, 0) to this layout.
    """
    params = {"layers": [], "header": None}
    keys = jax.random.split(key, num_layers + 1)
    bound = 1.0 / math.sqrt(in_channels * 9)
    for i in range(num_layers):
        kw, kb = jax.random.split(keys[i])
        w = jax.random.uniform(kw, (3, 3, in_channels, in_channels),
                               minval=-bound, maxval=bound, dtype=jnp.float32)
        b = jax.random.uniform(kb, (in_channels,),
                               minval=-bound, maxval=bound, dtype=jnp.float32)
        params["layers"].append((w, b))
    kw, kb = jax.random.split(keys[-1])
    out_ch = num_anchors * 4
    w = jax.random.uniform(kw, (3, 3, in_channels, out_ch),
                           minval=-bound, maxval=bound, dtype=jnp.float32)
    b = jax.random.uniform(kb, (out_ch,),
                           minval=-bound, maxval=bound, dtype=jnp.float32)
    params["header"] = (w, b)
    return params


if __name__ == "__main__":
    # Small deterministic example: batch=2, channels=32, spatial=8x8,
    # num_anchors=4, num_layers=2 (lane-dense: W*C=256, W*Co=128).
    N, C, H, W = 2, 32, 8, 8
    num_anchors, num_layers = 4, 2

    key = jax.random.PRNGKey(0)
    k_x, k_p = jax.random.split(key)
    x = jax.random.normal(k_x, (N, C, H, W), dtype=jnp.float32)
    params = init_regressor_head_params(k_p, C, num_anchors, num_layers)

    out = jax.block_until_ready(regressor_head_forward(params, x, num_anchors))
    assert out.shape == (N, H * W * num_anchors, 4), out.shape

    ref = jax.block_until_ready(regressor_head_reference(params, x, num_anchors))
    max_err = float(jnp.max(jnp.abs(out - ref)))
    assert max_err < 5e-2, f"max abs error vs f32 reference: {max_err}"

    print("KERNEL_OK")
</pallas_src>

<mosaic_0001>
module attributes {stable_mosaic.version = 11 : i64} {
  func.func @_head_kernel(%arg0: i32, %arg1: memref<2x8x256xbf16, #tpu.memory_space<vmem>>, %arg2: memref<2x960x256xbf16, #tpu.memory_space<vmem>>, %arg3: memref<2x1x256xf32, #tpu.memory_space<vmem>>, %arg4: memref<960x128xbf16, #tpu.memory_space<vmem>>, %arg5: memref<1x128xf32, #tpu.memory_space<vmem>>, %arg6: memref<2x8x128xf32, #tpu.memory_space<vmem>>) attributes {dimension_semantics = [#tpu.dimension_semantics<parallel>], iteration_bounds = array<i64: 1>, scalar_prefetch = 0 : i64, scratch_operands = 0 : i64, tpu.core_type = #tpu.core_type<tc>, window_params = [{transform_indices = @transform_0, window_bounds = array<i64: 2, 8, 256>}, {pipeline_mode = #tpu.pipeline_mode<synchronous>, transform_indices = @transform_1, window_bounds = array<i64: 2, 960, 256>}, {pipeline_mode = #tpu.pipeline_mode<synchronous>, transform_indices = @transform_2, window_bounds = array<i64: 2, 1, 256>}, {pipeline_mode = #tpu.pipeline_mode<synchronous>, transform_indices = @transform_3, window_bounds = array<i64: 960, 128>}, {pipeline_mode = #tpu.pipeline_mode<synchronous>, transform_indices = @transform_4, window_bounds = array<i64: 1, 128>}, {transform_indices = @transform_5, window_bounds = array<i64: 2, 8, 128>}]} {
    %cst = arith.constant 0.000000e+00 : bf16
    %0 = vector.broadcast %cst : bf16 to vector<2x1x320xbf16>
    %cst_0 = arith.constant 0.000000e+00 : bf16
    %1 = vector.broadcast %cst_0 : bf16 to vector<2x8x32xbf16>
    %c0 = arith.constant 0 : index
    %c0_1 = arith.constant 0 : index
    %c0_2 = arith.constant 0 : index
    %2 = vector.load %arg1[%c0, %c0_1, %c0_2] : memref<2x8x256xbf16, #tpu.memory_space<vmem>>, vector<2x8x256xbf16>
    %3 = tpu.concatenate %1, %2, %1 in 2 : vector<2x8x32xbf16>, vector<2x8x256xbf16>, vector<2x8x32xbf16> -> vector<2x8x320xbf16>
    %4 = tpu.concatenate %0, %3, %0 in 1 : vector<2x1x320xbf16>, vector<2x8x320xbf16>, vector<2x1x320xbf16> -> vector<2x10x320xbf16>
    %c0_3 = arith.constant 0 : index
    %c0_4 = arith.constant 0 : index
    %c0_5 = arith.constant 0 : index
    %5 = vector.load %arg3[%c0_3, %c0_4, %c0_5] : memref<2x1x256xf32, #tpu.memory_space<vmem>>, vector<1x1x256xf32>
    %6 = vector.shape_cast %5 : vector<1x1x256xf32> to vector<1x256xf32>
    %7 = vector.shape_cast %6 : vector<1x256xf32> to vector<1x256xf32>
    %8 = vector.broadcast %7 : vector<1x256xf32> to vector<16x256xf32>
    %9 = vector.extract_strided_slice %4 {offsets = [0, 0, 0], sizes = [2, 8, 320], strides = [1, 1, 1]} : vector<2x10x320xbf16> to vector<2x8x320xbf16>
    %10 = vector.extract_strided_slice %4 {offsets = [0, 1, 0], sizes = [2, 8, 320], strides = [1, 1, 1]} : vector<2x10x320xbf16> to vector<2x8x320xbf16>
    %11 = vector.extract_strided_slice %4 {offsets = [0, 2, 0], sizes = [2, 8, 320], strides = [1, 1, 1]} : vector<2x10x320xbf16> to vector<2x8x320xbf16>
    %12 = tpu.concatenate %9, %10, %11 in 2 : vector<2x8x320xbf16>, vector<2x8x320xbf16>, vector<2x8x320xbf16> -> vector<2x8x960xbf16>
    %13 = vector.shape_cast %12 : vector<2x8x960xbf16> to vector<16x960xbf16>
    %c0_6 = arith.constant 0 : index
    %c0_7 = arith.constant 0 : index
    %c0_8 = arith.constant 0 : index
    %14 = vector.load %arg2[%c0_6, %c0_7, %c0_8] : memref<2x960x256xbf16, #tpu.memory_space<vmem>>, vector<1x960x256xbf16>
    %15 = vector.shape_cast %14 : vector<1x960x256xbf16> to vector<960x256xbf16>
    %cst_9 = arith.constant dense<0.000000e+00> : vector<16x256xf32>
    %16 = tpu.matmul %13, %15, %cst_9 {dimension_numbers = #tpu.dot_dimension_numbers<[1], [0], [0], [1], [0, 0, 1, 1], [], []>} : vector<16x960xbf16>, vector<960x256xbf16>, vector<16x256xf32> -> vector<16x256xf32>
    %17 = arith.addf %8, %16 : vector<16x256xf32>
    %cst_10 = arith.constant 0.000000e+00 : f32
    %18 = vector.broadcast %cst_10 : f32 to vector<16x256xf32>
    %19 = arith.maximumf %17, %18 : vector<16x256xf32>
    %20 = arith.truncf %19 : vector<16x256xf32> to vector<16x256xbf16>
    %21 = vector.shape_cast %20 : vector<16x256xbf16> to vector<2x8x256xbf16>
    %22 = tpu.concatenate %1, %21, %1 in 2 : vector<2x8x32xbf16>, vector<2x8x256xbf16>, vector<2x8x32xbf16> -> vector<2x8x320xbf16>
    %23 = tpu.concatenate %0, %22, %0 in 1 : vector<2x1x320xbf16>, vector<2x8x320xbf16>, vector<2x1x320xbf16> -> vector<2x10x320xbf16>
    %c1 = arith.constant 1 : index
    %c0_11 = arith.constant 0 : index
    %c0_12 = arith.constant 0 : index
    %24 = vector.load %arg3[%c1, %c0_11, %c0_12] : memref<2x1x256xf32, #tpu.memory_space<vmem>>, vector<1x1x256xf32>
    %25 = vector.shape_cast %24 : vector<1x1x256xf32> to vector<1x256xf32>
    %26 = vector.shape_cast %25 : vector<1x256xf32> to vector<1x256xf32>
    %27 = vector.broadcast %26 : vector<1x256xf32> to vector<16x256xf32>
    %28 = vector.extract_strided_slice %23 {offsets = [0, 0, 0], sizes = [2, 8, 320], strides = [1, 1, 1]} : vector<2x10x320xbf16> to vector<2x8x320xbf16>
    %29 = vector.extract_strided_slice %23 {offsets = [0, 1, 0], sizes = [2, 8, 320], strides = [1, 1, 1]} : vector<2x10x320xbf16> to vector<2x8x320xbf16>
    %30 = vector.extract_strided_slice %23 {offsets = [0, 2, 0], sizes = [2, 8, 320], strides = [1, 1, 1]} : vector<2x10x320xbf16> to vector<2x8x320xbf16>
    %31 = tpu.concatenate %28, %29, %30 in 2 : vector<2x8x320xbf16>, vector<2x8x320xbf16>, vector<2x8x320xbf16> -> vector<2x8x960xbf16>
    %32 = vector.shape_cast %31 : vector<2x8x960xbf16> to vector<16x960xbf16>
    %c1_13 = arith.constant 1 : index
    %c0_14 = arith.constant 0 : index
    %c0_15 = arith.constant 0 : index
    %33 = vector.load %arg2[%c1_13, %c0_14, %c0_15] : memref<2x960x256xbf16, #tpu.memory_space<vmem>>, vector<1x960x256xbf16>
    %34 = vector.shape_cast %33 : vector<1x960x256xbf16> to vector<960x256xbf16>
    %cst_16 = arith.constant dense<0.000000e+00> : vector<16x256xf32>
    %35 = tpu.matmul %32, %34, %cst_16 {dimension_numbers = #tpu.dot_dimension_numbers<[1], [0], [0], [1], [0, 0, 1, 1], [], []>} : vector<16x960xbf16>, vector<960x256xbf16>, vector<16x256xf32> -> vector<16x256xf32>
    %36 = arith.addf %27, %35 : vector<16x256xf32>
    %cst_17 = arith.constant 0.000000e+00 : f32
    %37 = vector.broadcast %cst_17 : f32 to vector<16x256xf32>
    %38 = arith.maximumf %36, %37 : vector<16x256xf32>
    %39 = arith.truncf %38 : vector<16x256xf32> to vector<16x256xbf16>
    %40 = vector.shape_cast %39 : vector<16x256xbf16> to vector<2x8x256xbf16>
    %41 = tpu.concatenate %1, %40, %1 in 2 : vector<2x8x32xbf16>, vector<2x8x256xbf16>, vector<2x8x32xbf16> -> vector<2x8x320xbf16>
    %42 = tpu.concatenate %0, %41, %0 in 1 : vector<2x1x320xbf16>, vector<2x8x320xbf16>, vector<2x1x320xbf16> -> vector<2x10x320xbf16>
    %c0_18 = arith.constant 0 : index
    %c0_19 = arith.constant 0 : index
    %43 = vector.load %arg5[%c0_18, %c0_19] : memref<1x128xf32, #tpu.memory_space<vmem>>, vector<1x128xf32>
    %44 = vector.shape_cast %43 : vector<1x128xf32> to vector<1x128xf32>
    %45 = vector.broadcast %44 : vector<1x128xf32> to vector<16x128xf32>
    %46 = vector.extract_strided_slice %42 {offsets = [0, 0, 0], sizes = [2, 8, 320], strides = [1, 1, 1]} : vector<2x10x320xbf16> to vector<2x8x320xbf16>
    %47 = vector.extract_strided_slice %42 {offsets = [0, 1, 0], sizes = [2, 8, 320], strides = [1, 1, 1]} : vector<2x10x320xbf16> to vector<2x8x320xbf16>
    %48 = vector.extract_strided_slice %42 {offsets = [0, 2, 0], sizes = [2, 8, 320], strides = [1, 1, 1]} : vector<2x10x320xbf16> to vector<2x8x320xbf16>
    %49 = tpu.concatenate %46, %47, %48 in 2 : vector<2x8x320xbf16>, vector<2x8x320xbf16>, vector<2x8x320xbf16> -> vector<2x8x960xbf16>
    %50 = vector.shape_cast %49 : vector<2x8x960xbf16> to vector<16x960xbf16>
    %c0_20 = arith.constant 0 : index
    %c0_21 = arith.constant 0 : index
    %51 = vector.load %arg4[%c0_20, %c0_21] : memref<960x128xbf16, #tpu.memory_space<vmem>>, vector<960x128xbf16>
    %cst_22 = arith.constant dense<0.000000e+00> : vector<16x128xf32>
    %52 = tpu.matmul %50, %51, %cst_22 {dimension_numbers = #tpu.dot_dimension_numbers<[1], [0], [0], [1], [0, 0, 1, 1], [], []>} : vector<16x960xbf16>, vector<960x128xbf16>, vector<16x128xf32> -> vector<16x128xf32>
    %53 = arith.addf %45, %52 : vector<16x128xf32>
    %54 = vector.shape_cast %53 : vector<16x128xf32> to vector<2x8x128xf32>
    %c0_23 = arith.constant 0 : index
    %c0_24 = arith.constant 0 : index
    %c0_25 = arith.constant 0 : index
    %55 = vector.load %arg6[%c0_23, %c0_24, %c0_25] : memref<2x8x128xf32, #tpu.memory_space<vmem>>, vector<2x8x128xf32>
    tpu.vector_store %arg6[%c0_23, %c0_24, %c0_25], %54 {strides = array<i32>} : memref<2x8x128xf32, #tpu.memory_space<vmem>>, vector<2x8x128xf32>,
    return
  }
  func.func @transform_0(%arg0: i32) -> (i32, i32, i32) {
    %c0_i32 = arith.constant 0 : i32
    %c0_i32_0 = arith.constant 0 : i32
    %c0_i32_1 = arith.constant 0 : i32
    return %arg0, %c0_i32, %c0_i32_0 : i32, i32, i32
  }
  func.func @transform_1(%arg0: i32) -> (i32, i32, i32) {
    %c0_i32 = arith.constant 0 : i32
    %c0_i32_0 = arith.constant 0 : i32
    %c0_i32_1 = arith.constant 0 : i32
    %c0_i32_2 = arith.constant 0 : i32
    return %c0_i32, %c0_i32_0, %c0_i32_1 : i32, i32, i32
  }
  func.func @transform_2(%arg0: i32) -> (i32, i32, i32) {
    %c0_i32 = arith.constant 0 : i32
    %c0_i32_0 = arith.constant 0 : i32
    %c0_i32_1 = arith.constant 0 : i32
    %c0_i32_2 = arith.constant 0 : i32
    return %c0_i32, %c0_i32_0, %c0_i32_1 : i32, i32, i32
  }
  func.func @transform_3(%arg0: i32) -> (i32, i32) {
    %c0_i32 = arith.constant 0 : i32
    %c0_i32_0 = arith.constant 0 : i32
    %c0_i32_1 = arith.constant 0 : i32
    return %c0_i32, %c0_i32_0 : i32, i32
  }
  func.func @transform_4(%arg0: i32) -> (i32, i32) {
    %c0_i32 = arith.constant 0 : i32
    %c0_i32_0 = arith.constant 0 : i32
    %c0_i32_1 = arith.constant 0 : i32
    return %c0_i32, %c0_i32_0 : i32, i32
  }
  func.func @transform_5(%arg0: i32) -> (i32, i32, i32) {
    %c0_i32 = arith.constant 0 : i32
    %c0_i32_0 = arith.constant 0 : i32
    %c0_i32_1 = arith.constant 0 : i32
    return %arg0, %c0_i32, %c0_i32_0 : i32, i32, i32
  }
}

</mosaic_0001>

<llo_original>
// kernel: tile.22
$region0: #{tile.22}
  #allocation0 [shape = 's32[1]{0}', space=sflag, size = 0x4, scoped, tag = 'scoped memory for tile.22']
  %s0 = inlined_call_operand.vmem [shape: f32[32], index: 0, kind: input, shape index: {}]
  %s1 = inlined_call_operand.vmem [shape: f32[8,32], index: 1, kind: output, shape index: {}]
  // Predicated region
  $region2: #{tile.22} parent=0 // pred_check
    _
  $region3: #{tile.22} parent=0 // pred_check_branch
    %3 = sbr.rel (0) target = $region5
  $region4: #{tile.22} parent=0 // pred_region
    _
  $region5: #{tile.22} parent=0 // pred_fallthru
    _
  %v4 = vld [vmem:[%s0] ss:$0 sm:$0xff]
  %5 = vst [vmem:[%s1] sm:$0xff] %v4

// kernel: tile.24
$region0: #{tile.24}
  %s0 = inlined_call_operand.vmem [shape: f32[8,32], index: 0, kind: input, shape index: {}]
  %s1 = inlined_call_operand.vmem [shape: f32[1,256], index: 1, kind: output, shape index: {}]
  $region1: #{tile.24} parent=0
    #allocation0 [shape = 'u8[8192]{0}', space=vmem, size = 0x2000, scoped, tag = 'scoped mem for output reshape']
    %s2 = smov 3
    %v3 = vld [vmem:[%s0] ss:$4 sm:%s2]
    %vm4 = vcmask 261120
    %5 = vst.msk [vmem:[#allocation0] ss:$8 sm:$0x3] %vm4, %v3
    %s6 = scalar_lea.vmem %s0, 3
    %s7 = smov 3
    %v8 = vld [vmem:[%s6] ss:$4 sm:%s7]
    %9 = vrot.lane.b32.xlu0 %v8, 96
    %v10 = vpop.permute.xlu0 %9
    %vm11 = vcmask 1048320
    %12 = vst.msk [vmem:[#allocation0] ss:$8 sm:$0x3] %vm11, %v10
    %s13 = scalar_lea.vmem %s0, 2
    %s14 = smov 3
    %v15 = vld [vmem:[%s13] ss:$4 sm:%s14]
    %16 = vrot.lane.b32.xlu0 %v15, 64
    %v17 = vpop.permute.xlu0 %16
    %vm18 = vcmask 785920
    %19 = vst.msk [vmem:[#allocation0] ss:$8 sm:$0x3] %vm18, %v17
    %s20 = scalar_lea.vmem %s0, 1
    %s21 = smov 3
    %v22 = vld [vmem:[%s20] ss:$4 sm:%s21]
    %23 = vrot.lane.b32.xlu0 %v22, 32
    %v24 = vpop.permute.xlu0 %23
    %vm25 = vcmask 523520
    %26 = vst.msk [vmem:[#allocation0] ss:$8 sm:$0x3] %vm25, %v24
    %s28 = sshllo.u32 0, 1
    %v30 = vld [vmem:[#allocation0] sm:%s28]
    %s31 = sshllo.u32 0, 1
    %32 = vst [vmem:[%s1] sm:%s31] %v30
    %s33 = scalar_lea.vmem [#allocation0], 8
    %v34 = vld [vmem:[%s33] sm:%s28]
    %s35 = sshllo.u32 0, 1
    %s36 = scalar_lea.vmem %s1, 1
    %37 = vst [vmem:[%s36] sm:%s35] %v34

// kernel: tile.28
$region0: #{tile.28}
  #allocation0 [shape = 's32[1]{0}', space=sflag, size = 0x4, scoped, tag = 'scoped memory for tile.28']
  %s0 = inlined_call_operand.vmem [shape: f32[16], index: 0, kind: input, shape index: {}]
  %s1 = inlined_call_operand.vmem [shape: f32[8,16], index: 1, kind: output, shape index: {}]
  // Predicated region
  $region2: #{tile.28} parent=0 // pred_check
    _
  $region3: #{tile.28} parent=0 // pred_check_branch
    %3 = sbr.rel (0) target = $region5
  $region4: #{tile.28} parent=0 // pred_region
    _
  $region5: #{tile.28} parent=0 // pred_fallthru
    _
  %v4 = vld [vmem:[%s0] ss:$0 sm:$0xff]
  %5 = vst [vmem:[%s1] sm:$0xff] %v4

// kernel: tile.29
$region0: #{tile.29}
  %s0 = inlined_call_operand.vmem [shape: f32[8,16], index: 0, kind: input, shape index: {}]
  %s1 = inlined_call_operand.vmem [shape: f32[1,128], index: 1, kind: output, shape index: {}]
  $region1: #{tile.29} parent=0
    #allocation0 [shape = 'u8[4096]{0}', space=vmem, size = 0x1000, scoped, tag = 'scoped mem for output reshape']
    %v2 = vld [vmem:[%s0] sm:$0x1]
    %vm3 = vcmask 130048
    %4 = vst.msk [vmem:[#allocation0] sm:$0x1] %vm3, %v2
    %s5 = scalar_lea.vmem %s0, 7
    %v6 = vld [vmem:[%s5] sm:$0x1]
    %7 = vrot.lane.b32.xlu0 %v6, 112
    %v8 = vpop.permute.xlu0 %7
    %vm9 = vcmask 1048448
    %10 = vst.msk [vmem:[#allocation0] sm:$0x1] %vm9, %v8
    %s11 = scalar_lea.vmem %s0, 6
    %v12 = vld [vmem:[%s11] sm:$0x1]
    %13 = vrot.lane.b32.xlu0 %v12, 96
    %v14 = vpop.permute.xlu0 %13
    %vm15 = vcmask 917248
    %16 = vst.msk [vmem:[#allocation0] sm:$0x1] %vm15, %v14
    %s17 = scalar_lea.vmem %s0, 5
    %v18 = vld [vmem:[%s17] sm:$0x1]
    %19 = vrot.lane.b32.xlu0 %v18, 80
    %v20 = vpop.permute.xlu0 %19
    %vm21 = vcmask 786048
    %22 = vst.msk [vmem:[#allocation0] sm:$0x1] %vm21, %v20
    %s23 = scalar_lea.vmem %s0, 4
    %v24 = vld [vmem:[%s23] sm:$0x1]
    %25 = vrot.lane.b32.xlu0 %v24, 64
    %v26 = vpop.permute.xlu0 %25
    %vm27 = vcmask 654848
    %28 = vst.msk [vmem:[#allocation0] sm:$0x1] %vm27, %v26
    %s29 = scalar_lea.vmem %s0, 3
    %v30 = vld [vmem:[%s29] sm:$0x1]
    %31 = vrot.lane.b32.xlu0 %v30, 48
    %v32 = vpop.permute.xlu0 %31
    %vm33 = vcmask 523648
    %34 = vst.msk [vmem:[#allocation0] sm:$0x1] %vm33, %v32
    %s35 = scalar_lea.vmem %s0, 2
    %v36 = vld [vmem:[%s35] sm:$0x1]
    %37 = vrot.lane.b32.xlu0 %v36, 32
    %v38 = vpop.permute.xlu0 %37
    %vm39 = vcmask 392448
    %40 = vst.msk [vmem:[#allocation0] sm:$0x1] %vm39, %v38
    %s41 = scalar_lea.vmem %s0, 1
    %v42 = vld [vmem:[%s41] sm:$0x1]
    %43 = vrot.lane.b32.xlu0 %v42, 16
    %v44 = vpop.permute.xlu0 %43
    %vm45 = vcmask 261248
    %46 = vst.msk [vmem:[#allocation0] sm:$0x1] %vm45, %v44
    %s48 = sshllo.u32 0, 1
    %v50 = vld [vmem:[#allocation0] sm:%s48]
    %s51 = sshllo.u32 0, 1
    %52 = vst [vmem:[%s1] sm:%s51] %v50

// kernel: regressor_head_forward.1
$region0: #{regressor_head_forward.1}
  #allocation0 [shape = 'u32[]', space=smem, size = 0x4, offset = 0x4, fixed_abs, tag = 'smem constant byte address 0x4 - core index']
  #allocation1 [shape = 'u32[144,128]{1,0:T(1,128)}', space=vmem, size = 0x12000, scoped, tag = 'internal scratch']
  %s0 = inlined_call_operand.vmem [shape: bf16[2,8,256], index: 0, kind: input, shape index: {}]
  %s1 = inlined_call_operand.vmem [shape: bf16[2,960,256], index: 1, kind: input, shape index: {}]
  %s2 = inlined_call_operand.vmem [shape: f32[2,1,256], index: 2, kind: input, shape index: {}]
  %s3 = inlined_call_operand.vmem [shape: bf16[960,128], index: 3, kind: input, shape index: {}]
  %s4 = inlined_call_operand.vmem [shape: f32[1,128], index: 4, kind: input, shape index: {}]
  %s5 = inlined_call_operand.vmem [shape: f32[2,8,128], index: 5, kind: output, shape index: {}]
  %s6 = sld [smem:[#allocation0]]
  $region30: #{regressor_head_forward.1} parent=0
    _
  %s8 = ssub.s32 1, %s6
  %s9 = scalar_select 0, %s8, %s6
  // Predicated region
  $region2: #{regressor_head_forward.1} parent=0 // pred_check
    _
  $region3: #{regressor_head_forward.1} parent=0 // pred_check_branch
    %11 = sbr.rel (0) target = $region5
  $region4: #{regressor_head_forward.1} parent=0 // pred_region
    _
  $region5: #{regressor_head_forward.1} parent=0 // pred_fallthru
    _
  // Predicated region
  $region6: #{regressor_head_forward.1} parent=0 // pred_check
    _
  $region7: #{regressor_head_forward.1} parent=0 // pred_check_branch
    %13 = sbr.rel (0) target = $region9
  $region8: #{regressor_head_forward.1} parent=0 // pred_region
    _
  $region9: #{regressor_head_forward.1} parent=0 // pred_fallthru
    _
  // Predicated region
  $region10: #{regressor_head_forward.1} parent=0 // pred_check
    _
  $region11: #{regressor_head_forward.1} parent=0 // pred_check_branch
    %15 = sbr.rel (0) target = $region13
  $region12: #{regressor_head_forward.1} parent=0 // pred_region
    _
  $region13: #{regressor_head_forward.1} parent=0 // pred_fallthru
    _
  // Predicated region
  $region14: #{regressor_head_forward.1} parent=0 // pred_check
    _
  $region15: #{regressor_head_forward.1} parent=0 // pred_check_branch
    %17 = sbr.rel (0) target = $region17
  $region16: #{regressor_head_forward.1} parent=0 // pred_region
    _
  $region17: #{regressor_head_forward.1} parent=0 // pred_fallthru
    _
  // Predicated region
  $region18: #{regressor_head_forward.1} parent=0 // pred_check
    _
  $region19: #{regressor_head_forward.1} parent=0 // pred_check_branch
    %19 = sbr.rel (0) target = $region21
  $region20: #{regressor_head_forward.1} parent=0 // pred_region
    _
  $region21: #{regressor_head_forward.1} parent=0 // pred_fallthru
    _
  %v21 = vld [vmem:[%s0] sm:$0xff]
  %v22 = vld [vmem:[%s0 + $0x8] sm:$0xff]
  %v25 = vunpack.c.l.b16 %v21
  %v26 = vunpack.c.h.b16 %v21
  %v27 = vunpack.c.l.b16 %v22
  %v28 = vunpack.c.h.b16 %v22
  %v29 = vpack.c.b16 %v25, %v25
  %v30 = vpack.c.b16 %v26, %v26
  %v31 = vpack.c.b16 %v27, %v27
  %v32 = vpack.c.b16 %v28, %v28
  %33 = vrot.lane.b32.xlu0 %v29, 32
  %v34 = vpop.permute.xlu0 %33
  %35 = vrot.lane.b32.xlu0 %v30, 32
  %v36 = vpop.permute.xlu0 %35
  %37 = vrot.lane.b32.xlu0 %v31, 32
  %v38 = vpop.permute.xlu0 %37
  %39 = vrot.lane.b32.xlu0 %v32, 32
  %v40 = vpop.permute.xlu0 %39
  %vm41 = vcmask 261120
  %v42 = vsel %vm41, %v34, %v36
  %v43 = vsel %vm41, %v38, %v40
  %vm44 = vcmask 261120
  %v47 = vsel %vm44, 0, %v34
  %v49 = vsel %vm44, 0, %v38
  %v51 = vsel %vm44, %v36, 0
  %v53 = vsel %vm44, %v40, 0
  %v54 = vshrl.u32 %v47, 16
  %v56 = vrot.slane %v54, 7
  %v57 = vshll.u32 %v47, 16
  %v59 = vor.u32 %v56, %v57
  %v61 = vshrl.u32 %v42, 16
  %v63 = vrot.slane %v61, 7
  %v64 = vshll.u32 %v42, 16
  %v66 = vor.u32 %v63, %v64
  %v67 = vshrl.u32 %v51, 16
  %v69 = vrot.slane %v67, 7
  %v70 = vshll.u32 %v51, 16
  %v72 = vor.u32 %v69, %v70
  %v73 = vshrl.u32 %v49, 16
  %v75 = vrot.slane %v73, 7
  %v76 = vshll.u32 %v49, 16
  %v78 = vor.u32 %v75, %v76
  %v80 = vshrl.u32 %v43, 16
  %v82 = vrot.slane %v80, 7
  %v83 = vshll.u32 %v43, 16
  %v85 = vor.u32 %v82, %v83
  %v86 = vshrl.u32 %v53, 16
  %v88 = vrot.slane %v86, 7
  %v89 = vshll.u32 %v53, 16
  %v91 = vor.u32 %v88, %v89
  %vm98 = vcmask 1040384
  %vm99 = vsmask.f32 256
  %vm100 = vmand %vm98, %vm99
  %v101 = vsel %vm100, 0, %v59
  %v102 = vsel %vm100, 0, %v66
  %v103 = vsel %vm100, 0, %v72
  %v104 = vsel %vm100, 0, %v78
  %v105 = vsel %vm100, 0, %v85
  %v106 = vsel %vm100, 0, %v91
  %vm107 = vcmask 1044480
  %vm108 = vsmask.f32 4352
  %vm109 = vmand %vm107, %vm108
  %v110 = vsel %vm109, %v101, 0
  %v111 = vsel %vm109, %v102, 0
  %v112 = vsel %vm109, %v103, 0
  %v113 = vsel %vm109, %v104, 0
  %v114 = vsel %vm109, %v105, 0
  %v115 = vsel %vm109, %v106, 0
  %v116 = vld [vmem:[%s2] sm:$0x3]
  %v118 = vlaneseq
  %v119 = vshrl.u32 %v118, 7
  %v120 = vsub.s32 0, %v119
  %v121 = vrot.slane %v116, %v120
  %v122 = vlaneseq
  %v123 = vshrl.u32 %v122, 7
  %v124 = vsub.s32 1, %v123
  %v125 = vrot.slane %v116, %v124
  %v129 = vshrl.u32 %v110, 16
  %v131 = vshll.u32 %v110, 16
  %v133 = vrot.slane %v131, 1
  %v134 = vor.u32 %v129, %v133
  %v136 = vshrl.u32 %v111, 16
  %v138 = vshll.u32 %v111, 16
  %v140 = vrot.slane %v138, 1
  %v141 = vor.u32 %v136, %v140
  %v143 = vshrl.u32 %v112, 16
  %v145 = vshll.u32 %v112, 16
  %v147 = vrot.slane %v145, 1
  %v148 = vor.u32 %v143, %v147
  %v150 = vshrl.u32 %v113, 16
  %v152 = vshll.u32 %v113, 16
  %v154 = vrot.slane %v152, 1
  %v155 = vor.u32 %v150, %v154
  %v157 = vshrl.u32 %v114, 16
  %v159 = vshll.u32 %v114, 16
  %v161 = vrot.slane %v159, 1
  %v162 = vor.u32 %v157, %v161
  %v164 = vshrl.u32 %v115, 16
  %v166 = vshll.u32 %v115, 16
  %v168 = vrot.slane %v166, 1
  %v169 = vor.u32 %v164, %v168
  %170 = vrot.lane.b32.xlu0 %v134, 64
  %v171 = vpop.permute.xlu0 %170
  %172 = vrot.lane.b32.xlu0 %v141, 64
  %v173 = vpop.permute.xlu0 %172
  %174 = vrot.lane.b32.xlu0 %v148, 64
  %v175 = vpop.permute.xlu0 %174
  %176 = vrot.lane.b32.xlu0 %v155, 64
  %v177 = vpop.permute.xlu0 %176
  %178 = vrot.lane.b32.xlu0 %v162, 64
  %v179 = vpop.permute.xlu0 %178
  %180 = vrot.lane.b32.xlu0 %v169, 64
  %v181 = vpop.permute.xlu0 %180
  %vm182 = vcmask 523264
  %v183 = vsel %vm182, %v171, %v173
  %v184 = vsel %vm182, %v173, %v175
  %v185 = vsel %vm182, %v177, %v179
  %v186 = vsel %vm182, %v179, %v181
  %v193 = vrot.slane %v110, 1
  %v194 = vrot.slane %v111, 1
  %v195 = vrot.slane %v112, 1
  %v196 = vrot.slane %v113, 1
  %v197 = vrot.slane %v114, 1
  %v198 = vrot.slane %v115, 1
  %vm199 = vcmask 523264
  %v201 = vsel %vm199, %v112, %v171
  %v203 = vsel %vm199, %v115, %v177
  %v206 = vunpack.c.l.b16 %v110
  %v207 = vunpack.c.l.b16 %v111
  %v208 = vunpack.c.l.b16 %v201
  %v209 = vunpack.c.l.b16 %v183
  %v210 = vunpack.c.l.b16 %v184
  %v211 = vunpack.c.l.b16 %v193
  %v212 = vunpack.c.l.b16 %v194
  %v213 = vunpack.c.l.b16 %v195
  %v214 = vunpack.c.l.b16 %v113
  %v215 = vunpack.c.l.b16 %v114
  %v216 = vunpack.c.l.b16 %v203
  %v217 = vunpack.c.l.b16 %v185
  %v218 = vunpack.c.l.b16 %v186
  %v219 = vunpack.c.l.b16 %v196
  %v220 = vunpack.c.l.b16 %v197
  %v221 = vunpack.c.l.b16 %v198
  %v222 = vld [vmem:[%s1] sm:$0xff]
  %v223 = vld [vmem:[%s1 + $0x8] sm:$0xff]
  %v224 = vld [vmem:[%s1 + $0x10] sm:$0xff]
  %v225 = vld [vmem:[%s1 + $0x18] sm:$0xff]
  %v226 = vld [vmem:[%s1 + $0x20] sm:$0xff]
  %v227 = vld [vmem:[%s1 + $0x28] sm:$0xff]
  %v228 = vld [vmem:[%s1 + $0x30] sm:$0xff]
  %v229 = vld [vmem:[%s1 + $0x38] sm:$0xff]
  %v230 = vld [vmem:[%s1 + $0x40] sm:$0xff]
  %v231 = vld [vmem:[%s1 + $0x48] sm:$0xff]
  %v232 = vld [vmem:[%s1 + $0x50] sm:$0xff]
  %v233 = vld [vmem:[%s1 + $0x58] sm:$0xff]
  %v234 = vld [vmem:[%s1 + $0x60] sm:$0xff]
  %v235 = vld [vmem:[%s1 + $0x68] sm:$0xff]
  %v236 = vld [vmem:[%s1 + $0x70] sm:$0xff]
  %v237 = vld [vmem:[%s1 + $0x78] sm:$0xff]
  %v238 = vld [vmem:[%s1 + $0x80] sm:$0xff]
  %v239 = vld [vmem:[%s1 + $0x88] sm:$0xff]
  %v240 = vld [vmem:[%s1 + $0x90] sm:$0xff]
  %v241 = vld [vmem:[%s1 + $0x98] sm:$0xff]
  %v242 = vld [vmem:[%s1 + $0xa0] sm:$0xff]
  %v243 = vld [vmem:[%s1 + $0xa8] sm:$0xff]
  %v244 = vld [vmem:[%s1 + $0xb0] sm:$0xff]
  %v245 = vld [vmem:[%s1 + $0xb8] sm:$0xff]
  %v246 = vld [vmem:[%s1 + $0xc0] sm:$0xff]
  %v247 = vld [vmem:[%s1 + $0xc8] sm:$0xff]
  %v248 = vld [vmem:[%s1 + $0xd0] sm:$0xff]
  %v249 = vld [vmem:[%s1 + $0xd8] sm:$0xff]
  %v250 = vld [vmem:[%s1 + $0xe0] sm:$0xff]
  %v251 = vld [vmem:[%s1 + $0xe8] sm:$0xff]
  %v252 = vld [vmem:[%s1 + $0xf0] sm:$0xff]
  %v253 = vld [vmem:[%s1 + $0xf8] sm:$0xff]
  %v254 = vld [vmem:[%s1 + $0x100] sm:$0xff]
  %v255 = vld [vmem:[%s1 + $0x108] sm:$0xff]
  %v256 = vld [vmem:[%s1 + $0x110] sm:$0xff]
  %v257 = vld [vmem:[%s1 + $0x118] sm:$0xff]
  %v258 = vld [vmem:[%s1 + $0x120] sm:$0xff]
  %v259 = vld [vmem:[%s1 + $0x128] sm:$0xff]
  %v260 = vld [vmem:[%s1 + $0x130] sm:$0xff]
  %v261 = vld [vmem:[%s1 + $0x138] sm:$0xff]
  %v262 = vld [vmem:[%s1 + $0x140] sm:$0xff]
  %v263 = vld [vmem:[%s1 + $0x148] sm:$0xff]
  %v264 = vld [vmem:[%s1 + $0x150] sm:$0xff]
  %v265 = vld [vmem:[%s1 + $0x158] sm:$0xff]
  %v266 = vld [vmem:[%s1 + $0x160] sm:$0xff]
  %v267 = vld [vmem:[%s1 + $0x168] sm:$0xff]
  %v268 = vld [vmem:[%s1 + $0x170] sm:$0xff]
  %v269 = vld [vmem:[%s1 + $0x178] sm:$0xff]
  %v270 = vld [vmem:[%s1 + $0x180] sm:$0xff]
  %v271 = vld [vmem:[%s1 + $0x188] sm:$0xff]
  %v272 = vld [vmem:[%s1 + $0x190] sm:$0xff]
  %v273 = vld [vmem:[%s1 + $0x198] sm:$0xff]
  %v274 = vld [vmem:[%s1 + $0x1a0] sm:$0xff]
  %v275 = vld [vmem:[%s1 + $0x1a8] sm:$0xff]
  %v276 = vld [vmem:[%s1 + $0x1b0] sm:$0xff]
  %v277 = vld [vmem:[%s1 + $0x1b8] sm:$0xff]
  %v278 = vld [vmem:[%s1 + $0x1c0] sm:$0xff]
  %v279 = vld [vmem:[%s1 + $0x1c8] sm:$0xff]
  %v280 = vld [vmem:[%s1 + $0x1d0] sm:$0xff]
  %v281 = vld [vmem:[%s1 + $0x1d8] sm:$0xff]
  %v282 = vld [vmem:[%s1 + $0x1e0] sm:$0xff]
  %v283 = vld [vmem:[%s1 + $0x1e8] sm:$0xff]
  %v284 = vld [vmem:[%s1 + $0x1f0] sm:$0xff]
  %v285 = vld [vmem:[%s1 + $0x1f8] sm:$0xff]
  %v286 = vld [vmem:[%s1 + $0x200] sm:$0xff]
  %v287 = vld [vmem:[%s1 + $0x208] sm:$0xff]
  %v288 = vld [vmem:[%s1 + $0x210] sm:$0xff]
  %v289 = vld [vmem:[%s1 + $0x218] sm:$0xff]
  %v290 = vld [vmem:[%s1 + $0x220] sm:$0xff]
  %v291 = vld [vmem:[%s1 + $0x228] sm:$0xff]
  %v292 = vld [vmem:[%s1 + $0x230] sm:$0xff]
  %v293 = vld [vmem:[%s1 + $0x238] sm:$0xff]
  %v294 = vld [vmem:[%s1 + $0x240] sm:$0xff]
  %v295 = vld [vmem:[%s1 + $0x248] sm:$0xff]
  %v296 = vld [vmem:[%s1 + $0x250] sm:$0xff]
  %v297 = vld [vmem:[%s1 + $0x258] sm:$0xff]
  %v298 = vld [vmem:[%s1 + $0x260] sm:$0xff]
  %v299 = vld [vmem:[%s1 + $0x268] sm:$0xff]
  %v300 = vld [vmem:[%s1 + $0x270] sm:$0xff]
  %v301 = vld [vmem:[%s1 + $0x278] sm:$0xff]
  %v302 = vld [vmem:[%s1 + $0x280] sm:$0xff]
  %v303 = vld [vmem:[%s1 + $0x288] sm:$0xff]
  %v304 = vld [vmem:[%s1 + $0x290] sm:$0xff]
  %v305 = vld [vmem:[%s1 + $0x298] sm:$0xff]
  %v306 = vld [vmem:[%s1 + $0x2a0] sm:$0xff]
  %v307 = vld [vmem:[%s1 + $0x2a8] sm:$0xff]
  %v308 = vld [vmem:[%s1 + $0x2b0] sm:$0xff]
  %v309 = vld [vmem:[%s1 + $0x2b8] sm:$0xff]
  %v310 = vld [vmem:[%s1 + $0x2c0] sm:$0xff]
  %v311 = vld [vmem:[%s1 + $0x2c8] sm:$0xff]
  %v312 = vld [vmem:[%s1 + $0x2d0] sm:$0xff]
  %v313 = vld [vmem:[%s1 + $0x2d8] sm:$0xff]
  %v314 = vld [vmem:[%s1 + $0x2e0] sm:$0xff]
  %v315 = vld [vmem:[%s1 + $0x2e8] sm:$0xff]
  %v316 = vld [vmem:[%s1 + $0x2f0] sm:$0xff]
  %v317 = vld [vmem:[%s1 + $0x2f8] sm:$0xff]
  %v318 = vld [vmem:[%s1 + $0x300] sm:$0xff]
  %v319 = vld [vmem:[%s1 + $0x308] sm:$0xff]
  %v320 = vld [vmem:[%s1 + $0x310] sm:$0xff]
  %v321 = vld [vmem:[%s1 + $0x318] sm:$0xff]
  %v322 = vld [vmem:[%s1 + $0x320] sm:$0xff]
  %v323 = vld [vmem:[%s1 + $0x328] sm:$0xff]
  %v324 = vld [vmem:[%s1 + $0x330] sm:$0xff]
  %v325 = vld [vmem:[%s1 + $0x338] sm:$0xff]
  %v326 = vld [vmem:[%s1 + $0x340] sm:$0xff]
  %v327 = vld [vmem:[%s1 + $0x348] sm:$0xff]
  %v328 = vld [vmem:[%s1 + $0x350] sm:$0xff]
  %v329 = vld [vmem:[%s1 + $0x358] sm:$0xff]
  %v330 = vld [vmem:[%s1 + $0x360] sm:$0xff]
  %v331 = vld [vmem:[%s1 + $0x368] sm:$0xff]
  %v332 = vld [vmem:[%s1 + $0x370] sm:$0xff]
  %v333 = vld [vmem:[%s1 + $0x378] sm:$0xff]
  %v334 = vld [vmem:[%s1 + $0x380] sm:$0xff]
  %v335 = vld [vmem:[%s1 + $0x388] sm:$0xff]
  %v336 = vld [vmem:[%s1 + $0x390] sm:$0xff]
  %v337 = vld [vmem:[%s1 + $0x398] sm:$0xff]
  %v338 = vld [vmem:[%s1 + $0x3a0] sm:$0xff]
  %v339 = vld [vmem:[%s1 + $0x3a8] sm:$0xff]
  %v340 = vld [vmem:[%s1 + $0x3b0] sm:$0xff]
  %v341 = vld [vmem:[%s1 + $0x3b8] sm:$0xff]
  %v342 = vpack.c.b16 %v214, %v206
  %v343 = vpack.c.b16 %v215, %v207
  %v344 = vpack.c.b16 %v216, %v208
  %v345 = vpack.c.b16 %v217, %v209
  %v346 = vpack.c.b16 %v218, %v210
  %v347 = vpack.c.b16 %v219, %v211
  %v348 = vpack.c.b16 %v220, %v212
  %v349 = vpack.c.b16 %v221, %v213
  %v477 = vunpack.c.l.b16 %v222
  %v478 = vunpack.c.h.b16 %v222
  %v479 = vunpack.c.l.b16 %v223
  %v480 = vunpack.c.h.b16 %v223
  %v481 = vunpack.c.l.b16 %v224
  %v482 = vunpack.c.h.b16 %v224
  %v483 = vunpack.c.l.b16 %v225
  %v484 = vunpack.c.h.b16 %v225
  %v485 = vunpack.c.l.b16 %v226
  %v486 = vunpack.c.h.b16 %v226
  %v487 = vunpack.c.l.b16 %v227
  %v488 = vunpack.c.h.b16 %v227
  %v489 = vunpack.c.l.b16 %v228
  %v490 = vunpack.c.h.b16 %v228
  %v491 = vunpack.c.l.b16 %v229
  %v492 = vunpack.c.h.b16 %v229
  %v493 = vunpack.c.l.b16 %v230
  %v494 = vunpack.c.h.b16 %v230
  %v495 = vunpack.c.l.b16 %v231
  %v496 = vunpack.c.h.b16 %v231
  %v497 = vunpack.c.l.b16 %v232
  %v498 = vunpack.c.h.b16 %v232
  %v499 = vunpack.c.l.b16 %v233
  %v500 = vunpack.c.h.b16 %v233
  %v501 = vunpack.c.l.b16 %v234
  %v502 = vunpack.c.h.b16 %v234
  %v503 = vunpack.c.l.b16 %v235
  %v504 = vunpack.c.h.b16 %v235
  %v505 = vunpack.c.l.b16 %v236
  %v506 = vunpack.c.h.b16 %v236
  %v507 = vunpack.c.l.b16 %v237
  %v508 = vunpack.c.h.b16 %v237
  %v509 = vunpack.c.l.b16 %v238
  %v510 = vunpack.c.h.b16 %v238
  %v511 = vunpack.c.l.b16 %v239
  %v512 = vunpack.c.h.b16 %v239
  %v513 = vunpack.c.l.b16 %v240
  %v514 = vunpack.c.h.b16 %v240
  %v515 = vunpack.c.l.b16 %v241
  %v516 = vunpack.c.h.b16 %v241
  %v517 = vunpack.c.l.b16 %v242
  %v518 = vunpack.c.h.b16 %v242
  %v519 = vunpack.c.l.b16 %v243
  %v520 = vunpack.c.h.b16 %v243
  %v521 = vunpack.c.l.b16 %v244
  %v522 = vunpack.c.h.b16 %v244
  %v523 = vunpack.c.l.b16 %v245
  %v524 = vunpack.c.h.b16 %v245
  %v525 = vunpack.c.l.b16 %v246
  %v526 = vunpack.c.h.b16 %v246
  %v527 = vunpack.c.l.b16 %v247
  %v528 = vunpack.c.h.b16 %v247
  %v529 = vunpack.c.l.b16 %v248
  %v530 = vunpack.c.h.b16 %v248
  %v531 = vunpack.c.l.b16 %v249
  %v532 = vunpack.c.h.b16 %v249
  %v533 = vunpack.c.l.b16 %v250
  %v534 = vunpack.c.h.b16 %v250
  %v535 = vunpack.c.l.b16 %v251
  %v536 = vunpack.c.h.b16 %v251
  %v537 = vunpack.c.l.b16 %v252
  %v538 = vunpack.c.h.b16 %v252
  %v539 = vunpack.c.l.b16 %v253
  %v540 = vunpack.c.h.b16 %v253
  %v541 = vunpack.c.l.b16 %v254
  %v542 = vunpack.c.h.b16 %v254
  %v543 = vunpack.c.l.b16 %v255
  %v544 = vunpack.c.h.b16 %v255
  %v545 = vunpack.c.l.b16 %v256
  %v546 = vunpack.c.h.b16 %v256
  %v547 = vunpack.c.l.b16 %v257
  %v548 = vunpack.c.h.b16 %v257
  %v549 = vunpack.c.l.b16 %v258
  %v550 = vunpack.c.h.b16 %v258
  %v551 = vunpack.c.l.b16 %v259
  %v552 = vunpack.c.h.b16 %v259
  %v553 = vunpack.c.l.b16 %v260
  %v554 = vunpack.c.h.b16 %v260
  %v555 = vunpack.c.l.b16 %v261
  %v556 = vunpack.c.h.b16 %v261
  %v557 = vunpack.c.l.b16 %v262
  %v558 = vunpack.c.h.b16 %v262
  %v559 = vunpack.c.l.b16 %v263
  %v560 = vunpack.c.h.b16 %v263
  %v561 = vunpack.c.l.b16 %v264
  %v562 = vunpack.c.h.b16 %v264
  %v563 = vunpack.c.l.b16 %v265
  %v564 = vunpack.c.h.b16 %v265
  %v565 = vunpack.c.l.b16 %v266
  %v566 = vunpack.c.h.b16 %v266
  %v567 = vunpack.c.l.b16 %v267
  %v568 = vunpack.c.h.b16 %v267
  %v569 = vunpack.c.l.b16 %v268
  %v570 = vunpack.c.h.b16 %v268
  %v571 = vunpack.c.l.b16 %v269
  %v572 = vunpack.c.h.b16 %v269
  %v573 = vunpack.c.l.b16 %v270
  %v574 = vunpack.c.h.b16 %v270
  %v575 = vunpack.c.l.b16 %v271
  %v576 = vunpack.c.h.b16 %v271
  %v577 = vunpack.c.l.b16 %v272
  %v578 = vunpack.c.h.b16 %v272
  %v579 = vunpack.c.l.b16 %v273
  %v580 = vunpack.c.h.b16 %v273
  %v581 = vunpack.c.l.b16 %v274
  %v582 = vunpack.c.h.b16 %v274
  %v583 = vunpack.c.l.b16 %v275
  %v584 = vunpack.c.h.b16 %v275
  %v585 = vunpack.c.l.b16 %v276
  %v586 = vunpack.c.h.b16 %v276
  %v587 = vunpack.c.l.b16 %v277
  %v588 = vunpack.c.h.b16 %v277
  %v589 = vunpack.c.l.b16 %v278
  %v590 = vunpack.c.h.b16 %v278
  %v591 = vunpack.c.l.b16 %v279
  %v592 = vunpack.c.h.b16 %v279
  %v593 = vunpack.c.l.b16 %v280
  %v594 = vunpack.c.h.b16 %v280
  %v595 = vunpack.c.l.b16 %v281
  %v596 = vunpack.c.h.b16 %v281
  %v597 = vunpack.c.l.b16 %v282
  %v598 = vunpack.c.h.b16 %v282
  %v599 = vunpack.c.l.b16 %v283
  %v600 = vunpack.c.h.b16 %v283
  %v601 = vunpack.c.l.b16 %v284
  %v602 = vunpack.c.h.b16 %v284
  %v603 = vunpack.c.l.b16 %v285
  %v604 = vunpack.c.h.b16 %v285
  %v605 = vunpack.c.l.b16 %v286
  %v606 = vunpack.c.h.b16 %v286
  %v607 = vunpack.c.l.b16 %v287
  %v608 = vunpack.c.h.b16 %v287
  %v609 = vunpack.c.l.b16 %v288
  %v610 = vunpack.c.h.b16 %v288
  %v611 = vunpack.c.l.b16 %v289
  %v612 = vunpack.c.h.b16 %v289
  %v613 = vunpack.c.l.b16 %v290
  %v614 = vunpack.c.h.b16 %v290
  %v615 = vunpack.c.l.b16 %v291
  %v616 = vunpack.c.h.b16 %v291
  %v617 = vunpack.c.l.b16 %v292
  %v618 = vunpack.c.h.b16 %v292
  %v619 = vunpack.c.l.b16 %v293
  %v620 = vunpack.c.h.b16 %v293
  %v621 = vunpack.c.l.b16 %v294
  %v622 = vunpack.c.h.b16 %v294
  %v623 = vunpack.c.l.b16 %v295
  %v624 = vunpack.c.h.b16 %v295
  %v625 = vunpack.c.l.b16 %v296
  %v626 = vunpack.c.h.b16 %v296
  %v627 = vunpack.c.l.b16 %v297
  %v628 = vunpack.c.h.b16 %v297
  %v629 = vunpack.c.l.b16 %v298
  %v630 = vunpack.c.h.b16 %v298
  %v631 = vunpack.c.l.b16 %v299
  %v632 = vunpack.c.h.b16 %v299
  %v633 = vunpack.c.l.b16 %v300
  %v634 = vunpack.c.h.b16 %v300
  %v635 = vunpack.c.l.b16 %v301
  %v636 = vunpack.c.h.b16 %v301
  %v637 = vunpack.c.l.b16 %v302
  %v638 = vunpack.c.h.b16 %v302
  %v639 = vunpack.c.l.b16 %v303
  %v640 = vunpack.c.h.b16 %v303
  %v641 = vunpack.c.l.b16 %v304
  %v642 = vunpack.c.h.b16 %v304
  %v643 = vunpack.c.l.b16 %v305
  %v644 = vunpack.c.h.b16 %v305
  %v645 = vunpack.c.l.b16 %v306
  %v646 = vunpack.c.h.b16 %v306
  %v647 = vunpack.c.l.b16 %v307
  %v648 = vunpack.c.h.b16 %v307
  %v649 = vunpack.c.l.b16 %v308
  %v650 = vunpack.c.h.b16 %v308
  %v651 = vunpack.c.l.b16 %v309
  %v652 = vunpack.c.h.b16 %v309
  %v653 = vunpack.c.l.b16 %v310
  %v654 = vunpack.c.h.b16 %v310
  %v655 = vunpack.c.l.b16 %v311
  %v656 = vunpack.c.h.b16 %v311
  %v657 = vunpack.c.l.b16 %v312
  %v658 = vunpack.c.h.b16 %v312
  %v659 = vunpack.c.l.b16 %v313
  %v660 = vunpack.c.h.b16 %v313
  %v661 = vunpack.c.l.b16 %v314
  %v662 = vunpack.c.h.b16 %v314
  %v663 = vunpack.c.l.b16 %v315
  %v664 = vunpack.c.h.b16 %v315
  %v665 = vunpack.c.l.b16 %v316
  %v666 = vunpack.c.h.b16 %v316
  %v667 = vunpack.c.l.b16 %v317
  %v668 = vunpack.c.h.b16 %v317
  %v669 = vunpack.c.l.b16 %v318
  %v670 = vunpack.c.h.b16 %v318
  %v671 = vunpack.c.l.b16 %v319
  %v672 = vunpack.c.h.b16 %v319
  %v673 = vunpack.c.l.b16 %v320
  %v674 = vunpack.c.h.b16 %v320
  %v675 = vunpack.c.l.b16 %v321
  %v676 = vunpack.c.h.b16 %v321
  %v677 = vunpack.c.l.b16 %v322
  %v678 = vunpack.c.h.b16 %v322
  %v679 = vunpack.c.l.b16 %v323
  %v680 = vunpack.c.h.b16 %v323
  %v681 = vunpack.c.l.b16 %v324
  %v682 = vunpack.c.h.b16 %v324
  %v683 = vunpack.c.l.b16 %v325
  %v684 = vunpack.c.h.b16 %v325
  %v685 = vunpack.c.l.b16 %v326
  %v686 = vunpack.c.h.b16 %v326
  %v687 = vunpack.c.l.b16 %v327
  %v688 = vunpack.c.h.b16 %v327
  %v689 = vunpack.c.l.b16 %v328
  %v690 = vunpack.c.h.b16 %v328
  %v691 = vunpack.c.l.b16 %v329
  %v692 = vunpack.c.h.b16 %v329
  %v693 = vunpack.c.l.b16 %v330
  %v694 = vunpack.c.h.b16 %v330
  %v695 = vunpack.c.l.b16 %v331
  %v696 = vunpack.c.h.b16 %v331
  %v697 = vunpack.c.l.b16 %v332
  %v698 = vunpack.c.h.b16 %v332
  %v699 = vunpack.c.l.b16 %v333
  %v700 = vunpack.c.h.b16 %v333
  %v701 = vunpack.c.l.b16 %v334
  %v702 = vunpack.c.h.b16 %v334
  %v703 = vunpack.c.l.b16 %v335
  %v704 = vunpack.c.h.b16 %v335
  %v705 = vunpack.c.l.b16 %v336
  %v706 = vunpack.c.h.b16 %v336
  %v707 = vunpack.c.l.b16 %v337
  %v708 = vunpack.c.h.b16 %v337
  %v709 = vunpack.c.l.b16 %v338
  %v710 = vunpack.c.h.b16 %v338
  %v711 = vunpack.c.l.b16 %v339
  %v712 = vunpack.c.h.b16 %v339
  %v713 = vunpack.c.l.b16 %v340
  %v714 = vunpack.c.h.b16 %v340
  %v715 = vunpack.c.l.b16 %v341
  %v716 = vunpack.c.h.b16 %v341
  %v717 = vpack.c.b16 %v479, %v477
  %v718 = vpack.c.b16 %v480, %v478
  %v719 = vpack.c.b16 %v483, %v481
  %v720 = vpack.c.b16 %v484, %v482
  %v721 = vpack.c.b16 %v487, %v485
  %v722 = vpack.c.b16 %v488, %v486
  %v723 = vpack.c.b16 %v491, %v489
  %v724 = vpack.c.b16 %v492, %v490
  %v725 = vpack.c.b16 %v495, %v493
  %v726 = vpack.c.b16 %v496, %v494
  %v727 = vpack.c.b16 %v499, %v497
  %v728 = vpack.c.b16 %v500, %v498
  %v729 = vpack.c.b16 %v503, %v501
  %v730 = vpack.c.b16 %v504, %v502
  %v731 = vpack.c.b16 %v507, %v505
  %v732 = vpack.c.b16 %v508, %v506
  %v733 = vpack.c.b16 %v511, %v509
  %v734 = vpack.c.b16 %v512, %v510
  %v735 = vpack.c.b16 %v515, %v513
  %v736 = vpack.c.b16 %v516, %v514
  %v737 = vpack.c.b16 %v519, %v517
  %v738 = vpack.c.b16 %v520, %v518
  %v739 = vpack.c.b16 %v523, %v521
  %v740 = vpack.c.b16 %v524, %v522
  %v741 = vpack.c.b16 %v527, %v525
  %v742 = vpack.c.b16 %v528, %v526
  %v743 = vpack.c.b16 %v531, %v529
  %v744 = vpack.c.b16 %v532, %v530
  %v745 = vpack.c.b16 %v535, %v533
  %v746 = vpack.c.b16 %v536, %v534
  %v747 = vpack.c.b16 %v539, %v537
  %v748 = vpack.c.b16 %v540, %v538
  %v749 = vpack.c.b16 %v543, %v541
  %v750 = vpack.c.b16 %v544, %v542
  %v751 = vpack.c.b16 %v547, %v545
  %v752 = vpack.c.b16 %v548, %v546
  %v753 = vpack.c.b16 %v551, %v549
  %v754 = vpack.c.b16 %v552, %v550
  %v755 = vpack.c.b16 %v555, %v553
  %v756 = vpack.c.b16 %v556, %v554
  %v757 = vpack.c.b16 %v559, %v557
  %v758 = vpack.c.b16 %v560, %v558
  %v759 = vpack.c.b16 %v563, %v561
  %v760 = vpack.c.b16 %v564, %v562
  %v761 = vpack.c.b16 %v567, %v565
  %v762 = vpack.c.b16 %v568, %v566
  %v763 = vpack.c.b16 %v571, %v569
  %v764 = vpack.c.b16 %v572, %v570
  %v765 = vpack.c.b16 %v575, %v573
  %v766 = vpack.c.b16 %v576, %v574
  %v767 = vpack.c.b16 %v579, %v577
  %v768 = vpack.c.b16 %v580, %v578
  %v769 = vpack.c.b16 %v583, %v581
  %v770 = vpack.c.b16 %v584, %v582
  %v771 = vpack.c.b16 %v587, %v585
  %v772 = vpack.c.b16 %v588, %v586
  %v773 = vpack.c.b16 %v591, %v589
  %v774 = vpack.c.b16 %v592, %v590
  %v775 = vpack.c.b16 %v595, %v593
  %v776 = vpack.c.b16 %v596, %v594
  %v777 = vpack.c.b16 %v599, %v597
  %v778 = vpack.c.b16 %v600, %v598
  %v779 = vpack.c.b16 %v603, %v601
  %v780 = vpack.c.b16 %v604, %v602
  %v781 = vpack.c.b16 %v607, %v605
  %v782 = vpack.c.b16 %v608, %v606
  %v783 = vpack.c.b16 %v611, %v609
  %v784 = vpack.c.b16 %v612, %v610
  %v785 = vpack.c.b16 %v615, %v613
  %v786 = vpack.c.b16 %v616, %v614
  %v787 = vpack.c.b16 %v619, %v617
  %v788 = vpack.c.b16 %v620, %v618
  %v789 = vpack.c.b16 %v623, %v621
  %v790 = vpack.c.b16 %v624, %v622
  %v791 = vpack.c.b16 %v627, %v625
  %v792 = vpack.c.b16 %v628, %v626
  %v793 = vpack.c.b16 %v631, %v629
  %v794 = vpack.c.b16 %v632, %v630
  %v795 = vpack.c.b16 %v635, %v633
  %v796 = vpack.c.b16 %v636, %v634
  %v797 = vpack.c.b16 %v639, %v637
  %v798 = vpack.c.b16 %v640, %v638
  %v799 = vpack.c.b16 %v643, %v641
  %v800 = vpack.c.b16 %v644, %v642
  %v801 = vpack.c.b16 %v647, %v645
  %v802 = vpack.c.b16 %v648, %v646
  %v803 = vpack.c.b16 %v651, %v649
  %v804 = vpack.c.b16 %v652, %v650
  %v805 = vpack.c.b16 %v655, %v653
  %v806 = vpack.c.b16 %v656, %v654
  %v807 = vpack.c.b16 %v659, %v657
  %v808 = vpack.c.b16 %v660, %v658
  %v809 = vpack.c.b16 %v663, %v661
  %v810 = vpack.c.b16 %v664, %v662
  %v811 = vpack.c.b16 %v667, %v665
  %v812 = vpack.c.b16 %v668, %v666
  %v813 = vpack.c.b16 %v671, %v669
  %v814 = vpack.c.b16 %v672, %v670
  %v815 = vpack.c.b16 %v675, %v673
  %v816 = vpack.c.b16 %v676, %v674
  %v817 = vpack.c.b16 %v679, %v677
  %v818 = vpack.c.b16 %v680, %v678
  %v819 = vpack.c.b16 %v683, %v681
  %v820 = vpack.c.b16 %v684, %v682
  %v821 = vpack.c.b16 %v687, %v685
  %v822 = vpack.c.b16 %v688, %v686
  %v823 = vpack.c.b16 %v691, %v689
  %v824 = vpack.c.b16 %v692, %v690
  %v825 = vpack.c.b16 %v695, %v693
  %v826 = vpack.c.b16 %v696, %v694
  %v827 = vpack.c.b16 %v699, %v697
  %v828 = vpack.c.b16 %v700, %v698
  %v829 = vpack.c.b16 %v703, %v701
  %v830 = vpack.c.b16 %v704, %v702
  %v831 = vpack.c.b16 %v707, %v705
  %v832 = vpack.c.b16 %v708, %v706
  %v833 = vpack.c.b16 %v711, %v709
  %v834 = vpack.c.b16 %v712, %v710
  %v835 = vpack.c.b16 %v715, %v713
  %v836 = vpack.c.b16 %v716, %v714
  %v958 = vsel %vm199, %v349, 0
  %960 = vmatprep.subr.bf16.mxu0 %v718
  %961 = vmatpush1.bf16.msra.mxu0 %v717
  %962 = vmatprep.subr.bf16.mxu0 %v720
  %963 = vmatpush1.bf16.msra.mxu0 %v719
  %964 = vmatprep.subr.bf16.mxu0 %v722
  %965 = vmatpush1.bf16.msra.mxu0 %v721
  %966 = vmatprep.subr.bf16.mxu0 %v724
  %967 = vmatpush1.bf16.msra.mxu0 %v723
  %968 = vmatprep.subr.bf16.mxu0 %v726
  %969 = vmatpush1.bf16.msra.mxu0 %v725
  %970 = vmatprep.subr.bf16.mxu0 %v728
  %971 = vmatpush1.bf16.msra.mxu0 %v727
  %972 = vmatprep.subr.bf16.mxu0 %v730
  %973 = vmatpush1.bf16.msra.mxu0 %v729
  %974 = vmatprep.subr.bf16.mxu0 %v732
  %975 = vmatpush1.bf16.msra.mxu0 %v731
  %976 = vmatprep.subr.bf16.mxu0 %v734
  %977 = vmatpush1.bf16.msra.mxu0 %v733
  %978 = vmatprep.subr.bf16.mxu0 %v736
  %979 = vmatpush1.bf16.msra.mxu0 %v735
  %980 = vmatprep.subr.bf16.mxu0 %v738
  %981 = vmatpush1.bf16.msra.mxu0 %v737
  %982 = vmatprep.subr.bf16.mxu0 %v740
  %983 = vmatpush1.bf16.msra.mxu0 %v739
  %984 = vmatprep.subr.bf16.mxu0 %v742
  %985 = vmatpush1.bf16.msra.mxu0 %v741
  %986 = vmatprep.subr.bf16.mxu0 %v744
  %987 = vmatpush1.bf16.msra.mxu0 %v743
  %988 = vmatprep.subr.bf16.mxu0 %v746
  %989 = vmatpush1.bf16.msra.mxu0 %v745
  %990 = vmatprep.subr.bf16.mxu0 %v748
  %991 = vmatpush1.bf16.msra.mxu0 %v747
  %992 = vmatprep.mubr.bf16.mxu0 %v343
  %993 = vmatmul.mubr.bf16.gmra.mrb[0].mxu0 %v342
  %v994 = vpop.f32.mrb[0].mxu0
  %v995 = vadd.f32 0.0, %v994
  %v996 = vpop.f32.mrb[0].mxu0
  %v997 = vadd.f32 0.0, %v996
  %v998 = vpop.f32.mrb[0].mxu0
  %v999 = vadd.f32 0.0, %v998
  %v1000 = vpop.f32.mrb[0].mxu0
  %v1001 = vadd.f32 0.0, %v1000
  %1002 = vdwg.mxu0
  %1003 = vmatprep.subr.bf16.mxu0 %v750
  %1004 = vmatpush1.bf16.msra.mxu0 %v749
  %1005 = vmatprep.subr.bf16.mxu0 %v752
  %1006 = vmatpush1.bf16.msra.mxu0 %v751
  %1007 = vmatprep.subr.bf16.mxu0 %v754
  %1008 = vmatpush1.bf16.msra.mxu0 %v753
  %1009 = vmatprep.subr.bf16.mxu0 %v756
  %1010 = vmatpush1.bf16.msra.mxu0 %v755
  %1011 = vmatprep.subr.bf16.mxu0 %v758
  %1012 = vmatpush1.bf16.msra.mxu0 %v757
  %1013 = vmatprep.subr.bf16.mxu0 %v760
  %1014 = vmatpush1.bf16.msra.mxu0 %v759
  %1015 = vmatprep.subr.bf16.mxu0 %v762
  %1016 = vmatpush1.bf16.msra.mxu0 %v761
  %1017 = vmatprep.subr.bf16.mxu0 %v764
  %1018 = vmatpush1.bf16.msra.mxu0 %v763
  %1019 = vmatprep.subr.bf16.mxu0 %v766
  %1020 = vmatpush1.bf16.msra.mxu0 %v765
  %1021 = vmatprep.subr.bf16.mxu0 %v768
  %1022 = vmatpush1.bf16.msra.mxu0 %v767
  %1023 = vmatprep.subr.bf16.mxu0 %v770
  %1024 = vmatpush1.bf16.msra.mxu0 %v769
  %1025 = vmatprep.subr.bf16.mxu0 %v772
  %1026 = vmatpush1.bf16.msra.mxu0 %v771
  %1027 = vmatprep.subr.bf16.mxu0 %v774
  %1028 = vmatpush1.bf16.msra.mxu0 %v773
  %1029 = vmatprep.subr.bf16.mxu0 %v776
  %1030 = vmatpush1.bf16.msra.mxu0 %v775
  %1031 = vmatprep.subr.bf16.mxu0 %v778
  %1032 = vmatpush1.bf16.msra.mxu0 %v777
  %1033 = vmatprep.subr.bf16.mxu0 %v780
  %1034 = vmatpush1.bf16.msra.mxu0 %v779
  %1035 = vmatprep.mubr.bf16.mxu0 %v345
  %1036 = vmatmul.mubr.bf16.gmra.mrb[0].mxu0 %v344
  %v1037 = vpop.f32.mrb[0].mxu0
  %v1038 = vadd.f32 %v995, %v1037
  %v1039 = vpop.f32.mrb[0].mxu0
  %v1040 = vadd.f32 %v997, %v1039
  %v1041 = vpop.f32.mrb[0].mxu0
  %v1042 = vadd.f32 %v999, %v1041
  %v1043 = vpop.f32.mrb[0].mxu0
  %v1044 = vadd.f32 %v1001, %v1043
  %1045 = vdwg.mxu0
  %1046 = vmatprep.subr.bf16.mxu0 %v782
  %1047 = vmatpush1.bf16.msra.mxu0 %v781
  %1048 = vmatprep.subr.bf16.mxu0 %v784
  %1049 = vmatpush1.bf16.msra.mxu0 %v783
  %1050 = vmatprep.subr.bf16.mxu0 %v786
  %1051 = vmatpush1.bf16.msra.mxu0 %v785
  %1052 = vmatprep.subr.bf16.mxu0 %v788
  %1053 = vmatpush1.bf16.msra.mxu0 %v787
  %1054 = vmatprep.subr.bf16.mxu0 %v790
  %1055 = vmatpush1.bf16.msra.mxu0 %v789
  %1056 = vmatprep.subr.bf16.mxu0 %v792
  %1057 = vmatpush1.bf16.msra.mxu0 %v791
  %1058 = vmatprep.subr.bf16.mxu0 %v794
  %1059 = vmatpush1.bf16.msra.mxu0 %v793
  %1060 = vmatprep.subr.bf16.mxu0 %v796
  %1061 = vmatpush1.bf16.msra.mxu0 %v795
  %1062 = vmatprep.subr.bf16.mxu0 %v798
  %1063 = vmatpush1.bf16.msra.mxu0 %v797
  %1064 = vmatprep.subr.bf16.mxu0 %v800
  %1065 = vmatpush1.bf16.msra.mxu0 %v799
  %1066 = vmatprep.subr.bf16.mxu0 %v802
  %1067 = vmatpush1.bf16.msra.mxu0 %v801
  %1068 = vmatprep.subr.bf16.mxu0 %v804
  %1069 = vmatpush1.bf16.msra.mxu0 %v803
  %1070 = vmatprep.subr.bf16.mxu0 %v806
  %1071 = vmatpush1.bf16.msra.mxu0 %v805
  %1072 = vmatprep.subr.bf16.mxu0 %v808
  %1073 = vmatpush1.bf16.msra.mxu0 %v807
  %1074 = vmatprep.subr.bf16.mxu0 %v810
  %1075 = vmatpush1.bf16.msra.mxu0 %v809
  %1076 = vmatprep.subr.bf16.mxu0 %v812
  %1077 = vmatpush1.bf16.msra.mxu0 %v811
  %1078 = vmatprep.mubr.bf16.mxu0 %v347
  %1079 = vmatmul.mubr.bf16.gmra.mrb[0].mxu0 %v346
  %v1080 = vpop.f32.mrb[0].mxu0
  %v1081 = vadd.f32 %v1038, %v1080
  %v1082 = vpop.f32.mrb[0].mxu0
  %v1083 = vadd.f32 %v1040, %v1082
  %v1084 = vpop.f32.mrb[0].mxu0
  %v1085 = vadd.f32 %v1042, %v1084
  %v1086 = vpop.f32.mrb[0].mxu0
  %v1087 = vadd.f32 %v1044, %v1086
  %1088 = vdwg.mxu0
  %1089 = vmatprep.subr.bf16.mxu0 %v814
  %1090 = vmatpush1.bf16.msra.mxu0 %v813
  %1091 = vmatprep.subr.bf16.mxu0 %v816
  %1092 = vmatpush1.bf16.msra.mxu0 %v815
  %1093 = vmatprep.subr.bf16.mxu0 %v818
  %1094 = vmatpush1.bf16.msra.mxu0 %v817
  %1095 = vmatprep.subr.bf16.mxu0 %v820
  %1096 = vmatpush1.bf16.msra.mxu0 %v819
  %1097 = vmatprep.subr.bf16.mxu0 %v822
  %1098 = vmatpush1.bf16.msra.mxu0 %v821
  %1099 = vmatprep.subr.bf16.mxu0 %v824
  %1100 = vmatpush1.bf16.msra.mxu0 %v823
  %1101 = vmatprep.subr.bf16.mxu0 %v826
  %1102 = vmatpush1.bf16.msra.mxu0 %v825
  %1103 = vmatprep.subr.bf16.mxu0 %v828
  %1104 = vmatpush1.bf16.msra.mxu0 %v827
  %1105 = vmatprep.subr.bf16.mxu0 %v830
  %1106 = vmatpush1.bf16.msra.mxu0 %v829
  %1107 = vmatprep.subr.bf16.mxu0 %v832
  %1108 = vmatpush1.bf16.msra.mxu0 %v831
  %1109 = vmatprep.subr.bf16.mxu0 %v834
  %1110 = vmatpush1.bf16.msra.mxu0 %v833
  %1111 = vmatprep.subr.bf16.mxu0 %v836
  %1112 = vmatpush1.bf16.msra.mxu0 %v835
  %1113 = vmatprep.subr.bf16.mxu0 0
  %1114 = vmatpush1.bf16.msra.mxu0 0
  %1115 = vmatprep.subr.bf16.mxu0 0
  %1116 = vmatpush1.bf16.msra.mxu0 0
  %1117 = vmatprep.subr.bf16.mxu0 0
  %1118 = vmatpush1.bf16.msra.mxu0 0
  %1119 = vmatprep.subr.bf16.mxu0 0
  %1120 = vmatpush1.bf16.msra.mxu0 0
  %1121 = vmatprep.mubr.bf16.mxu0 %v958
  %1122 = vmatmul.mubr.bf16.gmra.mrb[0].mxu0 %v348
  %v1123 = vpop.f32.mrb[0].mxu0
  %v1124 = vadd.f32 %v1081, %v1123
  %v1125 = vpop.f32.mrb[0].mxu0
  %v1126 = vadd.f32 %v1083, %v1125
  %v1127 = vpop.f32.mrb[0].mxu0
  %v1128 = vadd.f32 %v1085, %v1127
  %v1129 = vpop.f32.mrb[0].mxu0
  %v1130 = vadd.f32 %v1087, %v1129
  %1131 = vdwg.mxu0
  %v1132 = vadd.f32 %v121, %v1124
  %v1133 = vadd.f32 %v125, %v1126
  %v1134 = vadd.f32 %v121, %v1128
  %v1135 = vadd.f32 %v125, %v1130
  %v1136 = vmax.f32 %v1132, 0.0
  %v1137 = vmax.f32 %v1133, 0.0
  %v1138 = vmax.f32 %v1134, 0.0
  %v1139 = vmax.f32 %v1135, 0.0
  %v1140 = vpack.c.bf16 %v1138, %v1136
  %v1141 = vpack.c.bf16 %v1139, %v1137
  %v1144 = vunpack.c.l.b16 %v1140
  %v1145 = vunpack.c.l.b16 %v1141
  %v1146 = vunpack.c.h.b16 %v1140
  %v1147 = vunpack.c.h.b16 %v1141
  %v1148 = vpack.c.b16 %v1144, %v1144
  %v1149 = vpack.c.b16 %v1145, %v1145
  %v1150 = vpack.c.b16 %v1146, %v1146
  %v1151 = vpack.c.b16 %v1147, %v1147
  %1152 = vrot.lane.b32.xlu0 %v1148, 32
  %v1153 = vpop.permute.xlu0 %1152
  %1154 = vrot.lane.b32.xlu0 %v1149, 32
  %v1155 = vpop.permute.xlu0 %1154
  %1156 = vrot.lane.b32.xlu0 %v1150, 32
  %v1157 = vpop.permute.xlu0 %1156
  %1158 = vrot.lane.b32.xlu0 %v1151, 32
  %v1159 = vpop.permute.xlu0 %1158
  %v1160 = vsel %vm41, %v1153, %v1155
  %v1161 = vsel %vm41, %v1157, %v1159
  %v1163 = vsel %vm44, 0, %v1153
  %v1165 = vsel %vm44, 0, %v1157
  %v1167 = vsel %vm44, %v1155, 0
  %v1169 = vsel %vm44, %v1159, 0
  %v1170 = vshrl.u32 %v1163, 16
  %v1172 = vrot.slane %v1170, 7
  %v1173 = vshll.u32 %v1163, 16
  %v1175 = vor.u32 %v1172, %v1173
  %v1177 = vshrl.u32 %v1160, 16
  %v1179 = vrot.slane %v1177, 7
  %v1180 = vshll.u32 %v1160, 16
  %v1182 = vor.u32 %v1179, %v1180
  %v1183 = vshrl.u32 %v1167, 16
  %v1185 = vrot.slane %v1183, 7
  %v1186 = vshll.u32 %v1167, 16
  %v1188 = vor.u32 %v1185, %v1186
  %v1189 = vshrl.u32 %v1165, 16
  %v1191 = vrot.slane %v1189, 7
  %v1192 = vshll.u32 %v1165, 16
  %v1194 = vor.u32 %v1191, %v1192
  %v1196 = vshrl.u32 %v1161, 16
  %v1198 = vrot.slane %v1196, 7
  %v1199 = vshll.u32 %v1161, 16
  %v1201 = vor.u32 %v1198, %v1199
  %v1202 = vshrl.u32 %v1169, 16
  %v1204 = vrot.slane %v1202, 7
  %v1205 = vshll.u32 %v1169, 16
  %v1207 = vor.u32 %v1204, %v1205
  %v1214 = vsel %vm100, 0, %v1175
  %v1215 = vsel %vm100, 0, %v1182
  %v1216 = vsel %vm100, 0, %v1188
  %v1217 = vsel %vm100, 0, %v1194
  %v1218 = vsel %vm100, 0, %v1201
  %v1219 = vsel %vm100, 0, %v1207
  %v1220 = vsel %vm109, %v1214, 0
  %v1221 = vsel %vm109, %v1215, 0
  %v1222 = vsel %vm109, %v1216, 0
  %v1223 = vsel %vm109, %v1217, 0
  %v1224 = vsel %vm109, %v1218, 0
  %v1225 = vsel %vm109, %v1219, 0
  %s1226 = scalar_lea.vmem %s2, 2
  %v1227 = vld [vmem:[%s1226] sm:$0x3]
  %v1229 = vlaneseq
  %v1230 = vshrl.u32 %v1229, 7
  %v1231 = vsub.s32 0, %v1230
  %v1232 = vrot.slane %v1227, %v1231
  %v1233 = vlaneseq
  %v1234 = vshrl.u32 %v1233, 7
  %v1235 = vsub.s32 1, %v1234
  %v1236 = vrot.slane %v1227, %v1235
  %v1240 = vshrl.u32 %v1220, 16
  %v1242 = vshll.u32 %v1220, 16
  %v1244 = vrot.slane %v1242, 1
  %v1245 = vor.u32 %v1240, %v1244
  %v1247 = vshrl.u32 %v1221, 16
  %v1249 = vshll.u32 %v1221, 16
  %v1251 = vrot.slane %v1249, 1
  %v1252 = vor.u32 %v1247, %v1251
  %v1254 = vshrl.u32 %v1222, 16
  %v1256 = vshll.u32 %v1222, 16
  %v1258 = vrot.slane %v1256, 1
  %v1259 = vor.u32 %v1254, %v1258
  %v1261 = vshrl.u32 %v1223, 16
  %v1263 = vshll.u32 %v1223, 16
  %v1265 = vrot.slane %v1263, 1
  %v1266 = vor.u32 %v1261, %v1265
  %v1268 = vshrl.u32 %v1224, 16
  %v1270 = vshll.u32 %v1224, 16
  %v1272 = vrot.slane %v1270, 1
  %v1273 = vor.u32 %v1268, %v1272
  %v1275 = vshrl.u32 %v1225, 16
  %v1277 = vshll.u32 %v1225, 16
  %v1279 = vrot.slane %v1277, 1
  %v1280 = vor.u32 %v1275, %v1279
  %1281 = vrot.lane.b32.xlu0 %v1245, 64
  %v1282 = vpop.permute.xlu0 %1281
  %1283 = vrot.lane.b32.xlu0 %v1252, 64
  %v1284 = vpop.permute.xlu0 %1283
  %1285 = vrot.lane.b32.xlu0 %v1259, 64
  %v1286 = vpop.permute.xlu0 %1285
  %1287 = vrot.lane.b32.xlu0 %v1266, 64
  %v1288 = vpop.permute.xlu0 %1287
  %1289 = vrot.lane.b32.xlu0 %v1273, 64
  %v1290 = vpop.permute.xlu0 %1289
  %1291 = vrot.lane.b32.xlu0 %v1280, 64
  %v1292 = vpop.permute.xlu0 %1291
  %v1293 = vsel %vm182, %v1282, %v1284
  %v1294 = vsel %vm182, %v1284, %v1286
  %v1295 = vsel %vm182, %v1288, %v1290
  %v1296 = vsel %vm182, %v1290, %v1292
  %v1303 = vrot.slane %v1220, 1
  %v1304 = vrot.slane %v1221, 1
  %v1305 = vrot.slane %v1222, 1
  %v1306 = vrot.slane %v1223, 1
  %v1307 = vrot.slane %v1224, 1
  %v1308 = vrot.slane %v1225, 1
  %v1310 = vsel %vm199, %v1222, %v1282
  %v1312 = vsel %vm199, %v1225, %v1288
  %v1315 = vunpack.c.l.b16 %v1220
  %v1316 = vunpack.c.l.b16 %v1221
  %v1317 = vunpack.c.l.b16 %v1310
  %v1318 = vunpack.c.l.b16 %v1293
  %v1319 = vunpack.c.l.b16 %v1294
  %v1320 = vunpack.c.l.b16 %v1303
  %v1321 = vunpack.c.l.b16 %v1304
  %v1322 = vunpack.c.l.b16 %v1305
  %v1323 = vunpack.c.l.b16 %v1223
  %v1324 = vunpack.c.l.b16 %v1224
  %v1325 = vunpack.c.l.b16 %v1312
  %v1326 = vunpack.c.l.b16 %v1295
  %v1327 = vunpack.c.l.b16 %v1296
  %v1328 = vunpack.c.l.b16 %v1306
  %v1329 = vunpack.c.l.b16 %v1307
  %v1330 = vunpack.c.l.b16 %v1308
  %s1331 = scalar_lea.vmem %s1, 960
  %v1332 = vld [vmem:[%s1331] sm:$0xff]
  %v1333 = vld [vmem:[%s1331 + $0x8] sm:$0xff]
  %v1334 = vld [vmem:[%s1331 + $0x10] sm:$0xff]
  %v1335 = vld [vmem:[%s1331 + $0x18] sm:$0xff]
  %v1336 = vld [vmem:[%s1331 + $0x20] sm:$0xff]
  %v1337 = vld [vmem:[%s1331 + $0x28] sm:$0xff]
  %v1338 = vld [vmem:[%s1331 + $0x30] sm:$0xff]
  %v1339 = vld [vmem:[%s1331 + $0x38] sm:$0xff]
  %v1340 = vld [vmem:[%s1331 + $0x40] sm:$0xff]
  %v1341 = vld [vmem:[%s1331 + $0x48] sm:$0xff]
  %v1342 = vld [vmem:[%s1331 + $0x50] sm:$0xff]
  %v1343 = vld [vmem:[%s1331 + $0x58] sm:$0xff]
  %v1344 = vld [vmem:[%s1331 + $0x60] sm:$0xff]
  %v1345 = vld [vmem:[%s1331 + $0x68] sm:$0xff]
  %v1346 = vld [vmem:[%s1331 + $0x70] sm:$0xff]
  %v1347 = vld [vmem:[%s1331 + $0x78] sm:$0xff]
  %v1348 = vld [vmem:[%s1331 + $0x80] sm:$0xff]
  %v1349 = vld [vmem:[%s1331 + $0x88] sm:$0xff]
  %v1350 = vld [vmem:[%s1331 + $0x90] sm:$0xff]
  %v1351 = vld [vmem:[%s1331 + $0x98] sm:$0xff]
  %v1352 = vld [vmem:[%s1331 + $0xa0] sm:$0xff]
  %v1353 = vld [vmem:[%s1331 + $0xa8] sm:$0xff]
  %v1354 = vld [vmem:[%s1331 + $0xb0] sm:$0xff]
  %v1355 = vld [vmem:[%s1331 + $0xb8] sm:$0xff]
  %v1356 = vld [vmem:[%s1331 + $0xc0] sm:$0xff]
  %v1357 = vld [vmem:[%s1331 + $0xc8] sm:$0xff]
  %v1358 = vld [vmem:[%s1331 + $0xd0] sm:$0xff]
  %v1359 = vld [vmem:[%s1331 + $0xd8] sm:$0xff]
  %v1360 = vld [vmem:[%s1331 + $0xe0] sm:$0xff]
  %v1361 = vld [vmem:[%s1331 + $0xe8] sm:$0xff]
  %v1362 = vld [vmem:[%s1331 + $0xf0] sm:$0xff]
  %v1363 = vld [vmem:[%s1331 + $0xf8] sm:$0xff]
  %v1364 = vld [vmem:[%s1331 + $0x100] sm:$0xff]
  %v1365 = vld [vmem:[%s1331 + $0x108] sm:$0xff]
  %v1366 = vld [vmem:[%s1331 + $0x110] sm:$0xff]
  %v1367 = vld [vmem:[%s1331 + $0x118] sm:$0xff]
  %v1368 = vld [vmem:[%s1331 + $0x120] sm:$0xff]
  %v1369 = vld [vmem:[%s1331 + $0x128] sm:$0xff]
  %v1370 = vld [vmem:[%s1331 + $0x130] sm:$0xff]
  %v1371 = vld [vmem:[%s1331 + $0x138] sm:$0xff]
  %v1372 = vld [vmem:[%s1331 + $0x140] sm:$0xff]
  %v1373 = vld [vmem:[%s1331 + $0x148] sm:$0xff]
  %v1374 = vld [vmem:[%s1331 + $0x150] sm:$0xff]
  %v1375 = vld [vmem:[%s1331 + $0x158] sm:$0xff]
  %v1376 = vld [vmem:[%s1331 + $0x160] sm:$0xff]
  %v1377 = vld [vmem:[%s1331 + $0x168] sm:$0xff]
  %v1378 = vld [vmem:[%s1331 + $0x170] sm:$0xff]
  %v1379 = vld [vmem:[%s1331 + $0x178] sm:$0xff]
  %v1380 = vld [vmem:[%s1331 + $0x180] sm:$0xff]
  %v1381 = vld [vmem:[%s1331 + $0x188] sm:$0xff]
  %v1382 = vld [vmem:[%s1331 + $0x190] sm:$0xff]
  %v1383 = vld [vmem:[%s1331 + $0x198] sm:$0xff]
  %v1384 = vld [vmem:[%s1331 + $0x1a0] sm:$0xff]
  %v1385 = vld [vmem:[%s1331 + $0x1a8] sm:$0xff]
  %v1386 = vld [vmem:[%s1331 + $0x1b0] sm:$0xff]
  %v1387 = vld [vmem:[%s1331 + $0x1b8] sm:$0xff]
  %v1388 = vld [vmem:[%s1331 + $0x1c0] sm:$0xff]
  %v1389 = vld [vmem:[%s1331 + $0x1c8] sm:$0xff]
  %v1390 = vld [vmem:[%s1331 + $0x1d0] sm:$0xff]
  %v1391 = vld [vmem:[%s1331 + $0x1d8] sm:$0xff]
  %v1392 = vld [vmem:[%s1331 + $0x1e0] sm:$0xff]
  %v1393 = vld [vmem:[%s1331 + $0x1e8] sm:$0xff]
  %v1394 = vld [vmem:[%s1331 + $0x1f0] sm:$0xff]
  %v1395 = vld [vmem:[%s1331 + $0x1f8] sm:$0xff]
  %v1396 = vld [vmem:[%s1331 + $0x200] sm:$0xff]
  %v1397 = vld [vmem:[%s1331 + $0x208] sm:$0xff]
  %v1398 = vld [vmem:[%s1331 + $0x210] sm:$0xff]
  %v1399 = vld [vmem:[%s1331 + $0x218] sm:$0xff]
  %v1400 = vld [vmem:[%s1331 + $0x220] sm:$0xff]
  %v1401 = vld [vmem:[%s1331 + $0x228] sm:$0xff]
  %v1402 = vld [vmem:[%s1331 + $0x230] sm:$0xff]
  %v1403 = vld [vmem:[%s1331 + $0x238] sm:$0xff]
  %v1404 = vld [vmem:[%s1331 + $0x240] sm:$0xff]
  %v1405 = vld [vmem:[%s1331 + $0x248] sm:$0xff]
  %v1406 = vld [vmem:[%s1331 + $0x250] sm:$0xff]
  %v1407 = vld [vmem:[%s1331 + $0x258] sm:$0xff]
  %v1408 = vld [vmem:[%s1331 + $0x260] sm:$0xff]
  %v1409 = vld [vmem:[%s1331 + $0x268] sm:$0xff]
  %v1410 = vld [vmem:[%s1331 + $0x270] sm:$0xff]
  %v1411 = vld [vmem:[%s1331 + $0x278] sm:$0xff]
  %v1412 = vld [vmem:[%s1331 + $0x280] sm:$0xff]
  %v1413 = vld [vmem:[%s1331 + $0x288] sm:$0xff]
  %v1414 = vld [vmem:[%s1331 + $0x290] sm:$0xff]
  %v1415 = vld [vmem:[%s1331 + $0x298] sm:$0xff]
  %v1416 = vld [vmem:[%s1331 + $0x2a0] sm:$0xff]
  %v1417 = vld [vmem:[%s1331 + $0x2a8] sm:$0xff]
  %v1418 = vld [vmem:[%s1331 + $0x2b0] sm:$0xff]
  %v1419 = vld [vmem:[%s1331 + $0x2b8] sm:$0xff]
  %v1420 = vld [vmem:[%s1331 + $0x2c0] sm:$0xff]
  %v1421 = vld [vmem:[%s1331 + $0x2c8] sm:$0xff]
  %v1422 = vld [vmem:[%s1331 + $0x2d0] sm:$0xff]
  %v1423 = vld [vmem:[%s1331 + $0x2d8] sm:$0xff]
  %v1424 = vld [vmem:[%s1331 + $0x2e0] sm:$0xff]
  %v1425 = vld [vmem:[%s1331 + $0x2e8] sm:$0xff]
  %v1426 = vld [vmem:[%s1331 + $0x2f0] sm:$0xff]
  %v1427 = vld [vmem:[%s1331 + $0x2f8] sm:$0xff]
  %v1428 = vld [vmem:[%s1331 + $0x300] sm:$0xff]
  %v1429 = vld [vmem:[%s1331 + $0x308] sm:$0xff]
  %v1430 = vld [vmem:[%s1331 + $0x310] sm:$0xff]
  %v1431 = vld [vmem:[%s1331 + $0x318] sm:$0xff]
  %v1432 = vld [vmem:[%s1331 + $0x320] sm:$0xff]
  %v1433 = vld [vmem:[%s1331 + $0x328] sm:$0xff]
  %v1434 = vld [vmem:[%s1331 + $0x330] sm:$0xff]
  %v1435 = vld [vmem:[%s1331 + $0x338] sm:$0xff]
  %v1436 = vld [vmem:[%s1331 + $0x340] sm:$0xff]
  %v1437 = vld [vmem:[%s1331 + $0x348] sm:$0xff]
  %v1438 = vld [vmem:[%s1331 + $0x350] sm:$0xff]
  %v1439 = vld [vmem:[%s1331 + $0x358] sm:$0xff]
  %v1440 = vld [vmem:[%s1331 + $0x360] sm:$0xff]
  %v1441 = vld [vmem:[%s1331 + $0x368] sm:$0xff]
  %v1442 = vld [vmem:[%s1331 + $0x370] sm:$0xff]
  %v1443 = vld [vmem:[%s1331 + $0x378] sm:$0xff]
  %v1444 = vld [vmem:[%s1331 + $0x380] sm:$0xff]
  %v1445 = vld [vmem:[%s1331 + $0x388] sm:$0xff]
  %v1446 = vld [vmem:[%s1331 + $0x390] sm:$0xff]
  %v1447 = vld [vmem:[%s1331 + $0x398] sm:$0xff]
  %v1448 = vld [vmem:[%s1331 + $0x3a0] sm:$0xff]
  %v1449 = vld [vmem:[%s1331 + $0x3a8] sm:$0xff]
  %v1450 = vld [vmem:[%s1331 + $0x3b0] sm:$0xff]
  %v1451 = vld [vmem:[%s1331 + $0x3b8] sm:$0xff]
  %v1452 = vpack.c.b16 %v1323, %v1315
  %v1453 = vpack.c.b16 %v1324, %v1316
  %v1454 = vpack.c.b16 %v1325, %v1317
  %v1455 = vpack.c.b16 %v1326, %v1318
  %v1456 = vpack.c.b16 %v1327, %v1319
  %v1457 = vpack.c.b16 %v1328, %v1320
  %v1458 = vpack.c.b16 %v1329, %v1321
  %v1459 = vpack.c.b16 %v1330, %v1322
  %v1587 = vunpack.c.l.b16 %v1332
  %v1588 = vunpack.c.h.b16 %v1332
  %v1589 = vunpack.c.l.b16 %v1333
  %v1590 = vunpack.c.h.b16 %v1333
  %v1591 = vunpack.c.l.b16 %v1334
  %v1592 = vunpack.c.h.b16 %v1334
  %v1593 = vunpack.c.l.b16 %v1335
  %v1594 = vunpack.c.h.b16 %v1335
  %v1595 = vunpack.c.l.b16 %v1336
  %v1596 = vunpack.c.h.b16 %v1336
  %v1597 = vunpack.c.l.b16 %v1337
  %v1598 = vunpack.c.h.b16 %v1337
  %v1599 = vunpack.c.l.b16 %v1338
  %v1600 = vunpack.c.h.b16 %v1338
  %v1601 = vunpack.c.l.b16 %v1339
  %v1602 = vunpack.c.h.b16 %v1339
  %v1603 = vunpack.c.l.b16 %v1340
  %v1604 = vunpack.c.h.b16 %v1340
  %v1605 = vunpack.c.l.b16 %v1341
  %v1606 = vunpack.c.h.b16 %v1341
  %v1607 = vunpack.c.l.b16 %v1342
  %v1608 = vunpack.c.h.b16 %v1342
  %v1609 = vunpack.c.l.b16 %v1343
  %v1610 = vunpack.c.h.b16 %v1343
  %v1611 = vunpack.c.l.b16 %v1344
  %v1612 = vunpack.c.h.b16 %v1344
  %v1613 = vunpack.c.l.b16 %v1345
  %v1614 = vunpack.c.h.b16 %v1345
  %v1615 = vunpack.c.l.b16 %v1346
  %v1616 = vunpack.c.h.b16 %v1346
  %v1617 = vunpack.c.l.b16 %v1347
  %v1618 = vunpack.c.h.b16 %v1347
  %v1619 = vunpack.c.l.b16 %v1348
  %v1620 = vunpack.c.h.b16 %v1348
  %v1621 = vunpack.c.l.b16 %v1349
  %v1622 = vunpack.c.h.b16 %v1349
  %v1623 = vunpack.c.l.b16 %v1350
  %v1624 = vunpack.c.h.b16 %v1350
  %v1625 = vunpack.c.l.b16 %v1351
  %v1626 = vunpack.c.h.b16 %v1351
  %v1627 = vunpack.c.l.b16 %v1352
  %v1628 = vunpack.c.h.b16 %v1352
  %v1629 = vunpack.c.l.b16 %v1353
  %v1630 = vunpack.c.h.b16 %v1353
  %v1631 = vunpack.c.l.b16 %v1354
  %v1632 = vunpack.c.h.b16 %v1354
  %v1633 = vunpack.c.l.b16 %v1355
  %v1634 = vunpack.c.h.b16 %v1355
  %v1635 = vunpack.c.l.b16 %v1356
  %v1636 = vunpack.c.h.b16 %v1356
  %v1637 = vunpack.c.l.b16 %v1357
  %v1638 = vunpack.c.h.b16 %v1357
  %v1639 = vunpack.c.l.b16 %v1358
  %v1640 = vunpack.c.h.b16 %v1358
  %v1641 = vunpack.c.l.b16 %v1359
  %v1642 = vunpack.c.h.b16 %v1359
  %v1643 = vunpack.c.l.b16 %v1360
  %v1644 = vunpack.c.h.b16 %v1360
  %v1645 = vunpack.c.l.b16 %v1361
  %v1646 = vunpack.c.h.b16 %v1361
  %v1647 = vunpack.c.l.b16 %v1362
  %v1648 = vunpack.c.h.b16 %v1362
  %v1649 = vunpack.c.l.b16 %v1363
  %v1650 = vunpack.c.h.b16 %v1363
  %v1651 = vunpack.c.l.b16 %v1364
  %v1652 = vunpack.c.h.b16 %v1364
  %v1653 = vunpack.c.l.b16 %v1365
  %v1654 = vunpack.c.h.b16 %v1365
  %v1655 = vunpack.c.l.b16 %v1366
  %v1656 = vunpack.c.h.b16 %v1366
  %v1657 = vunpack.c.l.b16 %v1367
  %v1658 = vunpack.c.h.b16 %v1367
  %v1659 = vunpack.c.l.b16 %v1368
  %v1660 = vunpack.c.h.b16 %v1368
  %v1661 = vunpack.c.l.b16 %v1369
  %v1662 = vunpack.c.h.b16 %v1369
  %v1663 = vunpack.c.l.b16 %v1370
  %v1664 = vunpack.c.h.b16 %v1370
  %v1665 = vunpack.c.l.b16 %v1371
  %v1666 = vunpack.c.h.b16 %v1371
  %v1667 = vunpack.c.l.b16 %v1372
  %v1668 = vunpack.c.h.b16 %v1372
  %v1669 = vunpack.c.l.b16 %v1373
  %v1670 = vunpack.c.h.b16 %v1373
  %v1671 = vunpack.c.l.b16 %v1374
  %v1672 = vunpack.c.h.b16 %v1374
  %v1673 = vunpack.c.l.b16 %v1375
  %v1674 = vunpack.c.h.b16 %v1375
  %v1675 = vunpack.c.l.b16 %v1376
  %v1676 = vunpack.c.h.b16 %v1376
  %v1677 = vunpack.c.l.b16 %v1377
  %v1678 = vunpack.c.h.b16 %v1377
  %v1679 = vunpack.c.l.b16 %v1378
  %v1680 = vunpack.c.h.b16 %v1378
  %v1681 = vunpack.c.l.b16 %v1379
  %v1682 = vunpack.c.h.b16 %v1379
  %v1683 = vunpack.c.l.b16 %v1380
  %v1684 = vunpack.c.h.b16 %v1380
  %v1685 = vunpack.c.l.b16 %v1381
  %v1686 = vunpack.c.h.b16 %v1381
  %v1687 = vunpack.c.l.b16 %v1382
  %v1688 = vunpack.c.h.b16 %v1382
  %v1689 = vunpack.c.l.b16 %v1383
  %v1690 = vunpack.c.h.b16 %v1383
  %v1691 = vunpack.c.l.b16 %v1384
  %v1692 = vunpack.c.h.b16 %v1384
  %v1693 = vunpack.c.l.b16 %v1385
  %v1694 = vunpack.c.h.b16 %v1385
  %v1695 = vunpack.c.l.b16 %v1386
  %v1696 = vunpack.c.h.b16 %v1386
  %v1697 = vunpack.c.l.b16 %v1387
  %v1698 = vunpack.c.h.b16 %v1387
  %v1699 = vunpack.c.l.b16 %v1388
  %v1700 = vunpack.c.h.b16 %v1388
  %v1701 = vunpack.c.l.b16 %v1389
  %v1702 = vunpack.c.h.b16 %v1389
  %v1703 = vunpack.c.l.b16 %v1390
  %v1704 = vunpack.c.h.b16 %v1390
  %v1705 = vunpack.c.l.b16 %v1391
  %v1706 = vunpack.c.h.b16 %v1391
  %v1707 = vunpack.c.l.b16 %v1392
  %v1708 = vunpack.c.h.b16 %v1392
  %v1709 = vunpack.c.l.b16 %v1393
  %v1710 = vunpack.c.h.b16 %v1393
  %v1711 = vunpack.c.l.b16 %v1394
  %v1712 = vunpack.c.h.b16 %v1394
  %v1713 = vunpack.c.l.b16 %v1395
  %v1714 = vunpack.c.h.b16 %v1395
  %v1715 = vunpack.c.l.b16 %v1396
  %v1716 = vunpack.c.h.b16 %v1396
  %v1717 = vunpack.c.l.b16 %v1397
  %v1718 = vunpack.c.h.b16 %v1397
  %v1719 = vunpack.c.l.b16 %v1398
  %v1720 = vunpack.c.h.b16 %v1398
  %v1721 = vunpack.c.l.b16 %v1399
  %v1722 = vunpack.c.h.b16 %v1399
  %v1723 = vunpack.c.l.b16 %v1400
  %v1724 = vunpack.c.h.b16 %v1400
  %v1725 = vunpack.c.l.b16 %v1401
  %v1726 = vunpack.c.h.b16 %v1401
  %v1727 = vunpack.c.l.b16 %v1402
  %v1728 = vunpack.c.h.b16 %v1402
  %v1729 = vunpack.c.l.b16 %v1403
  %v1730 = vunpack.c.h.b16 %v1403
  %v1731 = vunpack.c.l.b16 %v1404
  %v1732 = vunpack.c.h.b16 %v1404
  %v1733 = vunpack.c.l.b16 %v1405
  %v1734 = vunpack.c.h.b16 %v1405
  %v1735 = vunpack.c.l.b16 %v1406
  %v1736 = vunpack.c.h.b16 %v1406
  %v1737 = vunpack.c.l.b16 %v1407
  %v1738 = vunpack.c.h.b16 %v1407
  %v1739 = vunpack.c.l.b16 %v1408
  %v1740 = vunpack.c.h.b16 %v1408
  %v1741 = vunpack.c.l.b16 %v1409
  %v1742 = vunpack.c.h.b16 %v1409
  %v1743 = vunpack.c.l.b16 %v1410
  %v1744 = vunpack.c.h.b16 %v1410
  %v1745 = vunpack.c.l.b16 %v1411
  %v1746 = vunpack.c.h.b16 %v1411
  %v1747 = vunpack.c.l.b16 %v1412
  %v1748 = vunpack.c.h.b16 %v1412
  %v1749 = vunpack.c.l.b16 %v1413
  %v1750 = vunpack.c.h.b16 %v1413
  %v1751 = vunpack.c.l.b16 %v1414
  %v1752 = vunpack.c.h.b16 %v1414
  %v1753 = vunpack.c.l.b16 %v1415
  %v1754 = vunpack.c.h.b16 %v1415
  %v1755 = vunpack.c.l.b16 %v1416
  %v1756 = vunpack.c.h.b16 %v1416
  %v1757 = vunpack.c.l.b16 %v1417
  %v1758 = vunpack.c.h.b16 %v1417
  %v1759 = vunpack.c.l.b16 %v1418
  %v1760 = vunpack.c.h.b16 %v1418
  %v1761 = vunpack.c.l.b16 %v1419
  %v1762 = vunpack.c.h.b16 %v1419
  %v1763 = vunpack.c.l.b16 %v1420
  %v1764 = vunpack.c.h.b16 %v1420
  %v1765 = vunpack.c.l.b16 %v1421
  %v1766 = vunpack.c.h.b16 %v1421
  %v1767 = vunpack.c.l.b16 %v1422
  %v1768 = vunpack.c.h.b16 %v1422
  %v1769 = vunpack.c.l.b16 %v1423
  %v1770 = vunpack.c.h.b16 %v1423
  %v1771 = vunpack.c.l.b16 %v1424
  %v1772 = vunpack.c.h.b16 %v1424
  %v1773 = vunpack.c.l.b16 %v1425
  %v1774 = vunpack.c.h.b16 %v1425
  %v1775 = vunpack.c.l.b16 %v1426
  %v1776 = vunpack.c.h.b16 %v1426
  %v1777 = vunpack.c.l.b16 %v1427
  %v1778 = vunpack.c.h.b16 %v1427
  %v1779 = vunpack.c.l.b16 %v1428
  %v1780 = vunpack.c.h.b16 %v1428
  %v1781 = vunpack.c.l.b16 %v1429
  %v1782 = vunpack.c.h.b16 %v1429
  %v1783 = vunpack.c.l.b16 %v1430
  %v1784 = vunpack.c.h.b16 %v1430
  %v1785 = vunpack.c.l.b16 %v1431
  %v1786 = vunpack.c.h.b16 %v1431
  %v1787 = vunpack.c.l.b16 %v1432
  %v1788 = vunpack.c.h.b16 %v1432
  %v1789 = vunpack.c.l.b16 %v1433
  %v1790 = vunpack.c.h.b16 %v1433
  %v1791 = vunpack.c.l.b16 %v1434
  %v1792 = vunpack.c.h.b16 %v1434
  %v1793 = vunpack.c.l.b16 %v1435
  %v1794 = vunpack.c.h.b16 %v1435
  %v1795 = vunpack.c.l.b16 %v1436
  %v1796 = vunpack.c.h.b16 %v1436
  %v1797 = vunpack.c.l.b16 %v1437
  %v1798 = vunpack.c.h.b16 %v1437
  %v1799 = vunpack.c.l.b16 %v1438
  %v1800 = vunpack.c.h.b16 %v1438
  %v1801 = vunpack.c.l.b16 %v1439
  %v1802 = vunpack.c.h.b16 %v1439
  %v1803 = vunpack.c.l.b16 %v1440
  %v1804 = vunpack.c.h.b16 %v1440
  %v1805 = vunpack.c.l.b16 %v1441
  %v1806 = vunpack.c.h.b16 %v1441
  %v1807 = vunpack.c.l.b16 %v1442
  %v1808 = vunpack.c.h.b16 %v1442
  %v1809 = vunpack.c.l.b16 %v1443
  %v1810 = vunpack.c.h.b16 %v1443
  %v1811 = vunpack.c.l.b16 %v1444
  %v1812 = vunpack.c.h.b16 %v1444
  %v1813 = vunpack.c.l.b16 %v1445
  %v1814 = vunpack.c.h.b16 %v1445
  %v1815 = vunpack.c.l.b16 %v1446
  %v1816 = vunpack.c.h.b16 %v1446
  %v1817 = vunpack.c.l.b16 %v1447
  %v1818 = vunpack.c.h.b16 %v1447
  %v1819 = vunpack.c.l.b16 %v1448
  %v1820 = vunpack.c.h.b16 %v1448
  %v1821 = vunpack.c.l.b16 %v1449
  %v1822 = vunpack.c.h.b16 %v1449
  %v1823 = vunpack.c.l.b16 %v1450
  %v1824 = vunpack.c.h.b16 %v1450
  %v1825 = vunpack.c.l.b16 %v1451
  %v1826 = vunpack.c.h.b16 %v1451
  %v1827 = vpack.c.b16 %v1589, %v1587
  %v1828 = vpack.c.b16 %v1590, %v1588
  %v1829 = vpack.c.b16 %v1593, %v1591
  %v1830 = vpack.c.b16 %v1594, %v1592
  %v1831 = vpack.c.b16 %v1597, %v1595
  %v1832 = vpack.c.b16 %v1598, %v1596
  %v1833 = vpack.c.b16 %v1601, %v1599
  %v1834 = vpack.c.b16 %v1602, %v1600
  %v1835 = vpack.c.b16 %v1605, %v1603
  %v1836 = vpack.c.b16 %v1606, %v1604
  %v1837 = vpack.c.b16 %v1609, %v1607
  %v1838 = vpack.c.b16 %v1610, %v1608
  %v1839 = vpack.c.b16 %v1613, %v1611
  %v1840 = vpack.c.b16 %v1614, %v1612
  %v1841 = vpack.c.b16 %v1617, %v1615
  %v1842 = vpack.c.b16 %v1618, %v1616
  %v1843 = vpack.c.b16 %v1621, %v1619
  %v1844 = vpack.c.b16 %v1622, %v1620
  %v1845 = vpack.c.b16 %v1625, %v1623
  %v1846 = vpack.c.b16 %v1626, %v1624
  %v1847 = vpack.c.b16 %v1629, %v1627
  %v1848 = vpack.c.b16 %v1630, %v1628
  %v1849 = vpack.c.b16 %v1633, %v1631
  %v1850 = vpack.c.b16 %v1634, %v1632
  %v1851 = vpack.c.b16 %v1637, %v1635
  %v1852 = vpack.c.b16 %v1638, %v1636
  %v1853 = vpack.c.b16 %v1641, %v1639
  %v1854 = vpack.c.b16 %v1642, %v1640
  %v1855 = vpack.c.b16 %v1645, %v1643
  %v1856 = vpack.c.b16 %v1646, %v1644
  %v1857 = vpack.c.b16 %v1649, %v1647
  %v1858 = vpack.c.b16 %v1650, %v1648
  %v1859 = vpack.c.b16 %v1653, %v1651
  %v1860 = vpack.c.b16 %v1654, %v1652
  %v1861 = vpack.c.b16 %v1657, %v1655
  %v1862 = vpack.c.b16 %v1658, %v1656
  %v1863 = vpack.c.b16 %v1661, %v1659
  %v1864 = vpack.c.b16 %v1662, %v1660
  %v1865 = vpack.c.b16 %v1665, %v1663
  %v1866 = vpack.c.b16 %v1666, %v1664
  %v1867 = vpack.c.b16 %v1669, %v1667
  %v1868 = vpack.c.b16 %v1670, %v1668
  %v1869 = vpack.c.b16 %v1673, %v1671
  %v1870 = vpack.c.b16 %v1674, %v1672
  %v1871 = vpack.c.b16 %v1677, %v1675
  %v1872 = vpack.c.b16 %v1678, %v1676
  %v1873 = vpack.c.b16 %v1681, %v1679
  %v1874 = vpack.c.b16 %v1682, %v1680
  %v1875 = vpack.c.b16 %v1685, %v1683
  %v1876 = vpack.c.b16 %v1686, %v1684
  %v1877 = vpack.c.b16 %v1689, %v1687
  %v1878 = vpack.c.b16 %v1690, %v1688
  %v1879 = vpack.c.b16 %v1693, %v1691
  %v1880 = vpack.c.b16 %v1694, %v1692
  %v1881 = vpack.c.b16 %v1697, %v1695
  %v1882 = vpack.c.b16 %v1698, %v1696
  %v1883 = vpack.c.b16 %v1701, %v1699
  %v1884 = vpack.c.b16 %v1702, %v1700
  %v1885 = vpack.c.b16 %v1705, %v1703
  %v1886 = vpack.c.b16 %v1706, %v1704
  %v1887 = vpack.c.b16 %v1709, %v1707
  %v1888 = vpack.c.b16 %v1710, %v1708
  %v1889 = vpack.c.b16 %v1713, %v1711
  %v1890 = vpack.c.b16 %v1714, %v1712
  %v1891 = vpack.c.b16 %v1717, %v1715
  %v1892 = vpack.c.b16 %v1718, %v1716
  %v1893 = vpack.c.b16 %v1721, %v1719
  %v1894 = vpack.c.b16 %v1722, %v1720
  %v1895 = vpack.c.b16 %v1725, %v1723
  %v1896 = vpack.c.b16 %v1726, %v1724
  %v1897 = vpack.c.b16 %v1729, %v1727
  %v1898 = vpack.c.b16 %v1730, %v1728
  %v1899 = vpack.c.b16 %v1733, %v1731
  %v1900 = vpack.c.b16 %v1734, %v1732
  %v1901 = vpack.c.b16 %v1737, %v1735
  %v1902 = vpack.c.b16 %v1738, %v1736
  %v1903 = vpack.c.b16 %v1741, %v1739
  %v1904 = vpack.c.b16 %v1742, %v1740
  %v1905 = vpack.c.b16 %v1745, %v1743
  %v1906 = vpack.c.b16 %v1746, %v1744
  %v1907 = vpack.c.b16 %v1749, %v1747
  %v1908 = vpack.c.b16 %v1750, %v1748
  %v1909 = vpack.c.b16 %v1753, %v1751
  %v1910 = vpack.c.b16 %v1754, %v1752
  %v1911 = vpack.c.b16 %v1757, %v1755
  %v1912 = vpack.c.b16 %v1758, %v1756
  %v1913 = vpack.c.b16 %v1761, %v1759
  %v1914 = vpack.c.b16 %v1762, %v1760
  %v1915 = vpack.c.b16 %v1765, %v1763
  %v1916 = vpack.c.b16 %v1766, %v1764
  %v1917 = vpack.c.b16 %v1769, %v1767
  %v1918 = vpack.c.b16 %v1770, %v1768
  %v1919 = vpack.c.b16 %v1773, %v1771
  %v1920 = vpack.c.b16 %v1774, %v1772
  %v1921 = vpack.c.b16 %v1777, %v1775
  %v1922 = vpack.c.b16 %v1778, %v1776
  %v1923 = vpack.c.b16 %v1781, %v1779
  %v1924 = vpack.c.b16 %v1782, %v1780
  %v1925 = vpack.c.b16 %v1785, %v1783
  %v1926 = vpack.c.b16 %v1786, %v1784
  %v1927 = vpack.c.b16 %v1789, %v1787
  %v1928 = vpack.c.b16 %v1790, %v1788
  %v1929 = vpack.c.b16 %v1793, %v1791
  %v1930 = vpack.c.b16 %v1794, %v1792
  %v1931 = vpack.c.b16 %v1797, %v1795
  %v1932 = vpack.c.b16 %v1798, %v1796
  %v1933 = vpack.c.b16 %v1801, %v1799
  %v1934 = vpack.c.b16 %v1802, %v1800
  %v1935 = vpack.c.b16 %v1805, %v1803
  %v1936 = vpack.c.b16 %v1806, %v1804
  %v1937 = vpack.c.b16 %v1809, %v1807
  %v1938 = vpack.c.b16 %v1810, %v1808
  %v1939 = vpack.c.b16 %v1813, %v1811
  %v1940 = vpack.c.b16 %v1814, %v1812
  %v1941 = vpack.c.b16 %v1817, %v1815
  %v1942 = vpack.c.b16 %v1818, %v1816
  %v1943 = vpack.c.b16 %v1821, %v1819
  %v1944 = vpack.c.b16 %v1822, %v1820
  %v1945 = vpack.c.b16 %v1825, %v1823
  %v1946 = vpack.c.b16 %v1826, %v1824
  %v2068 = vsel %vm199, %v1459, 0
  %2070 = vmatprep.subr.bf16.mxu0 %v1828
  %2071 = vmatpush1.bf16.msra.mxu0 %v1827
  %2072 = vmatprep.subr.bf16.mxu0 %v1830
  %2073 = vmatpush1.bf16.msra.mxu0 %v1829
  %2074 = vmatprep.subr.bf16.mxu0 %v1832
  %2075 = vmatpush1.bf16.msra.mxu0 %v1831
  %2076 = vmatprep.subr.bf16.mxu0 %v1834
  %2077 = vmatpush1.bf16.msra.mxu0 %v1833
  %2078 = vmatprep.subr.bf16.mxu0 %v1836
  %2079 = vmatpush1.bf16.msra.mxu0 %v1835
  %2080 = vmatprep.subr.bf16.mxu0 %v1838
  %2081 = vmatpush1.bf16.msra.mxu0 %v1837
  %2082 = vmatprep.subr.bf16.mxu0 %v1840
  %2083 = vmatpush1.bf16.msra.mxu0 %v1839
  %2084 = vmatprep.subr.bf16.mxu0 %v1842
  %2085 = vmatpush1.bf16.msra.mxu0 %v1841
  %2086 = vmatprep.subr.bf16.mxu0 %v1844
  %2087 = vmatpush1.bf16.msra.mxu0 %v1843
  %2088 = vmatprep.subr.bf16.mxu0 %v1846
  %2089 = vmatpush1.bf16.msra.mxu0 %v1845
  %2090 = vmatprep.subr.bf16.mxu0 %v1848
  %2091 = vmatpush1.bf16.msra.mxu0 %v1847
  %2092 = vmatprep.subr.bf16.mxu0 %v1850
  %2093 = vmatpush1.bf16.msra.mxu0 %v1849
  %2094 = vmatprep.subr.bf16.mxu0 %v1852
  %2095 = vmatpush1.bf16.msra.mxu0 %v1851
  %2096 = vmatprep.subr.bf16.mxu0 %v1854
  %2097 = vmatpush1.bf16.msra.mxu0 %v1853
  %2098 = vmatprep.subr.bf16.mxu0 %v1856
  %2099 = vmatpush1.bf16.msra.mxu0 %v1855
  %2100 = vmatprep.subr.bf16.mxu0 %v1858
  %2101 = vmatpush1.bf16.msra.mxu0 %v1857
  %2102 = vmatprep.mubr.bf16.mxu0 %v1453
  %2103 = vmatmul.mubr.bf16.gmra.mrb[0].mxu0 %v1452
  %v2104 = vpop.f32.mrb[0].mxu0
  %v2105 = vadd.f32 0.0, %v2104
  %v2106 = vpop.f32.mrb[0].mxu0
  %v2107 = vadd.f32 0.0, %v2106
  %v2108 = vpop.f32.mrb[0].mxu0
  %v2109 = vadd.f32 0.0, %v2108
  %v2110 = vpop.f32.mrb[0].mxu0
  %v2111 = vadd.f32 0.0, %v2110
  %2112 = vdwg.mxu0
  %2113 = vmatprep.subr.bf16.mxu0 %v1860
  %2114 = vmatpush1.bf16.msra.mxu0 %v1859
  %2115 = vmatprep.subr.bf16.mxu0 %v1862
  %2116 = vmatpush1.bf16.msra.mxu0 %v1861
  %2117 = vmatprep.subr.bf16.mxu0 %v1864
  %2118 = vmatpush1.bf16.msra.mxu0 %v1863
  %2119 = vmatprep.subr.bf16.mxu0 %v1866
  %2120 = vmatpush1.bf16.msra.mxu0 %v1865
  %2121 = vmatprep.subr.bf16.mxu0 %v1868
  %2122 = vmatpush1.bf16.msra.mxu0 %v1867
  %2123 = vmatprep.subr.bf16.mxu0 %v1870
  %2124 = vmatpush1.bf16.msra.mxu0 %v1869
  %2125 = vmatprep.subr.bf16.mxu0 %v1872
  %2126 = vmatpush1.bf16.msra.mxu0 %v1871
  %2127 = vmatprep.subr.bf16.mxu0 %v1874
  %2128 = vmatpush1.bf16.msra.mxu0 %v1873
  %2129 = vmatprep.subr.bf16.mxu0 %v1876
  %2130 = vmatpush1.bf16.msra.mxu0 %v1875
  %2131 = vmatprep.subr.bf16.mxu0 %v1878
  %2132 = vmatpush1.bf16.msra.mxu0 %v1877
  %2133 = vmatprep.subr.bf16.mxu0 %v1880
  %2134 = vmatpush1.bf16.msra.mxu0 %v1879
  %2135 = vmatprep.subr.bf16.mxu0 %v1882
  %2136 = vmatpush1.bf16.msra.mxu0 %v1881
  %2137 = vmatprep.subr.bf16.mxu0 %v1884
  %2138 = vmatpush1.bf16.msra.mxu0 %v1883
  %2139 = vmatprep.subr.bf16.mxu0 %v1886
  %2140 = vmatpush1.bf16.msra.mxu0 %v1885
  %2141 = vmatprep.subr.bf16.mxu0 %v1888
  %2142 = vmatpush1.bf16.msra.mxu0 %v1887
  %2143 = vmatprep.subr.bf16.mxu0 %v1890
  %2144 = vmatpush1.bf16.msra.mxu0 %v1889
  %2145 = vmatprep.mubr.bf16.mxu0 %v1455
  %2146 = vmatmul.mubr.bf16.gmra.mrb[0].mxu0 %v1454
  %v2147 = vpop.f32.mrb[0].mxu0
  %v2148 = vadd.f32 %v2105, %v2147
  %v2149 = vpop.f32.mrb[0].mxu0
  %v2150 = vadd.f32 %v2107, %v2149
  %v2151 = vpop.f32.mrb[0].mxu0
  %v2152 = vadd.f32 %v2109, %v2151
  %v2153 = vpop.f32.mrb[0].mxu0
  %v2154 = vadd.f32 %v2111, %v2153
  %2155 = vdwg.mxu0
  %2156 = vmatprep.subr.bf16.mxu0 %v1892
  %2157 = vmatpush1.bf16.msra.mxu0 %v1891
  %2158 = vmatprep.subr.bf16.mxu0 %v1894
  %2159 = vmatpush1.bf16.msra.mxu0 %v1893
  %2160 = vmatprep.subr.bf16.mxu0 %v1896
  %2161 = vmatpush1.bf16.msra.mxu0 %v1895
  %2162 = vmatprep.subr.bf16.mxu0 %v1898
  %2163 = vmatpush1.bf16.msra.mxu0 %v1897
  %2164 = vmatprep.subr.bf16.mxu0 %v1900
  %2165 = vmatpush1.bf16.msra.mxu0 %v1899
  %2166 = vmatprep.subr.bf16.mxu0 %v1902
  %2167 = vmatpush1.bf16.msra.mxu0 %v1901
  %2168 = vmatprep.subr.bf16.mxu0 %v1904
  %2169 = vmatpush1.bf16.msra.mxu0 %v1903
  %2170 = vmatprep.subr.bf16.mxu0 %v1906
  %2171 = vmatpush1.bf16.msra.mxu0 %v1905
  %2172 = vmatprep.subr.bf16.mxu0 %v1908
  %2173 = vmatpush1.bf16.msra.mxu0 %v1907
  %2174 = vmatprep.subr.bf16.mxu0 %v1910
  %2175 = vmatpush1.bf16.msra.mxu0 %v1909
  %2176 = vmatprep.subr.bf16.mxu0 %v1912
  %2177 = vmatpush1.bf16.msra.mxu0 %v1911
  %2178 = vmatprep.subr.bf16.mxu0 %v1914
  %2179 = vmatpush1.bf16.msra.mxu0 %v1913
  %2180 = vmatprep.subr.bf16.mxu0 %v1916
  %2181 = vmatpush1.bf16.msra.mxu0 %v1915
  %2182 = vmatprep.subr.bf16.mxu0 %v1918
  %2183 = vmatpush1.bf16.msra.mxu0 %v1917
  %2184 = vmatprep.subr.bf16.mxu0 %v1920
  %2185 = vmatpush1.bf16.msra.mxu0 %v1919
  %2186 = vmatprep.subr.bf16.mxu0 %v1922
  %2187 = vmatpush1.bf16.msra.mxu0 %v1921
  %2188 = vmatprep.mubr.bf16.mxu0 %v1457
  %2189 = vmatmul.mubr.bf16.gmra.mrb[0].mxu0 %v1456
  %v2190 = vpop.f32.mrb[0].mxu0
  %v2191 = vadd.f32 %v2148, %v2190
  %v2192 = vpop.f32.mrb[0].mxu0
  %v2193 = vadd.f32 %v2150, %v2192
  %v2194 = vpop.f32.mrb[0].mxu0
  %v2195 = vadd.f32 %v2152, %v2194
  %v2196 = vpop.f32.mrb[0].mxu0
  %v2197 = vadd.f32 %v2154, %v2196
  %2198 = vdwg.mxu0
  %2199 = vmatprep.subr.bf16.mxu0 %v1924
  %2200 = vmatpush1.bf16.msra.mxu0 %v1923
  %2201 = vmatprep.subr.bf16.mxu0 %v1926
  %2202 = vmatpush1.bf16.msra.mxu0 %v1925
  %2203 = vmatprep.subr.bf16.mxu0 %v1928
  %2204 = vmatpush1.bf16.msra.mxu0 %v1927
  %2205 = vmatprep.subr.bf16.mxu0 %v1930
  %2206 = vmatpush1.bf16.msra.mxu0 %v1929
  %2207 = vmatprep.subr.bf16.mxu0 %v1932
  %2208 = vmatpush1.bf16.msra.mxu0 %v1931
  %2209 = vmatprep.subr.bf16.mxu0 %v1934
  %2210 = vmatpush1.bf16.msra.mxu0 %v1933
  %2211 = vmatprep.subr.bf16.mxu0 %v1936
  %2212 = vmatpush1.bf16.msra.mxu0 %v1935
  %2213 = vmatprep.subr.bf16.mxu0 %v1938
  %2214 = vmatpush1.bf16.msra.mxu0 %v1937
  %2215 = vmatprep.subr.bf16.mxu0 %v1940
  %2216 = vmatpush1.bf16.msra.mxu0 %v1939
  %2217 = vmatprep.subr.bf16.mxu0 %v1942
  %2218 = vmatpush1.bf16.msra.mxu0 %v1941
  %2219 = vmatprep.subr.bf16.mxu0 %v1944
  %2220 = vmatpush1.bf16.msra.mxu0 %v1943
  %2221 = vmatprep.subr.bf16.mxu0 %v1946
  %2222 = vmatpush1.bf16.msra.mxu0 %v1945
  %2223 = vmatprep.subr.bf16.mxu0 0
  %2224 = vmatpush1.bf16.msra.mxu0 0
  %2225 = vmatprep.subr.bf16.mxu0 0
  %2226 = vmatpush1.bf16.msra.mxu0 0
  %2227 = vmatprep.subr.bf16.mxu0 0
  %2228 = vmatpush1.bf16.msra.mxu0 0
  %2229 = vmatprep.subr.bf16.mxu0 0
  %2230 = vmatpush1.bf16.msra.mxu0 0
  %2231 = vmatprep.mubr.bf16.mxu0 %v2068
  %2232 = vmatmul.mubr.bf16.gmra.mrb[0].mxu0 %v1458
  %v2233 = vpop.f32.mrb[0].mxu0
  %v2234 = vadd.f32 %v2191, %v2233
  %v2235 = vpop.f32.mrb[0].mxu0
  %v2236 = vadd.f32 %v2193, %v2235
  %v2237 = vpop.f32.mrb[0].mxu0
  %v2238 = vadd.f32 %v2195, %v2237
  %v2239 = vpop.f32.mrb[0].mxu0
  %v2240 = vadd.f32 %v2197, %v2239
  %2241 = vdwg.mxu0
  %v2242 = vadd.f32 %v1232, %v2234
  %v2243 = vadd.f32 %v1236, %v2236
  %v2244 = vadd.f32 %v1232, %v2238
  %v2245 = vadd.f32 %v1236, %v2240
  %v2246 = vmax.f32 %v2242, 0.0
  %v2247 = vmax.f32 %v2243, 0.0
  %v2248 = vmax.f32 %v2244, 0.0
  %v2249 = vmax.f32 %v2245, 0.0
  %v2250 = vpack.c.bf16 %v2248, %v2246
  %v2251 = vpack.c.bf16 %v2249, %v2247
  %v2254 = vunpack.c.l.b16 %v2250
  %v2255 = vunpack.c.l.b16 %v2251
  %v2256 = vunpack.c.h.b16 %v2250
  %v2257 = vunpack.c.h.b16 %v2251
  %v2258 = vpack.c.b16 %v2254, %v2254
  %v2259 = vpack.c.b16 %v2255, %v2255
  %v2260 = vpack.c.b16 %v2256, %v2256
  %v2261 = vpack.c.b16 %v2257, %v2257
  %2262 = vrot.lane.b32.xlu0 %v2258, 32
  %v2263 = vpop.permute.xlu0 %2262
  %2264 = vrot.lane.b32.xlu0 %v2259, 32
  %v2265 = vpop.permute.xlu0 %2264
  %2266 = vrot.lane.b32.xlu0 %v2260, 32
  %v2267 = vpop.permute.xlu0 %2266
  %2268 = vrot.lane.b32.xlu0 %v2261, 32
  %v2269 = vpop.permute.xlu0 %2268
  %v2270 = vsel %vm41, %v2263, %v2265
  %v2271 = vsel %vm41, %v2267, %v2269
  %v2273 = vsel %vm44, 0, %v2263
  %v2275 = vsel %vm44, 0, %v2267
  %v2277 = vsel %vm44, %v2265, 0
  %v2279 = vsel %vm44, %v2269, 0
  %v2280 = vshrl.u32 %v2273, 16
  %v2282 = vrot.slane %v2280, 7
  %v2283 = vshll.u32 %v2273, 16
  %v2285 = vor.u32 %v2282, %v2283
  %v2287 = vshrl.u32 %v2270, 16
  %v2289 = vrot.slane %v2287, 7
  %v2290 = vshll.u32 %v2270, 16
  %v2292 = vor.u32 %v2289, %v2290
  %v2293 = vshrl.u32 %v2277, 16
  %v2295 = vrot.slane %v2293, 7
  %v2296 = vshll.u32 %v2277, 16
  %v2298 = vor.u32 %v2295, %v2296
  %v2299 = vshrl.u32 %v2275, 16
  %v2301 = vrot.slane %v2299, 7
  %v2302 = vshll.u32 %v2275, 16
  %v2304 = vor.u32 %v2301, %v2302
  %v2306 = vshrl.u32 %v2271, 16
  %v2308 = vrot.slane %v2306, 7
  %v2309 = vshll.u32 %v2271, 16
  %v2311 = vor.u32 %v2308, %v2309
  %v2312 = vshrl.u32 %v2279, 16
  %v2314 = vrot.slane %v2312, 7
  %v2315 = vshll.u32 %v2279, 16
  %v2317 = vor.u32 %v2314, %v2315
  %v2324 = vsel %vm100, 0, %v2285
  %v2325 = vsel %vm100, 0, %v2292
  %v2326 = vsel %vm100, 0, %v2298
  %v2327 = vsel %vm100, 0, %v2304
  %v2328 = vsel %vm100, 0, %v2311
  %v2329 = vsel %vm100, 0, %v2317
  %v2330 = vsel %vm109, %v2324, 0
  %v2331 = vsel %vm109, %v2325, 0
  %v2332 = vsel %vm109, %v2326, 0
  %v2333 = vsel %vm109, %v2327, 0
  %v2334 = vsel %vm109, %v2328, 0
  %v2335 = vsel %vm109, %v2329, 0
  %v2336 = vld [vmem:[%s4] sm:$0x1]
  %v2338 = vlaneseq
  %v2339 = vshrl.u32 %v2338, 7
  %v2340 = vsub.s32 0, %v2339
  %v2341 = vrot.slane %v2336, %v2340
  %v2344 = vshrl.u32 %v2330, 16
  %v2346 = vshll.u32 %v2330, 16
  %v2348 = vrot.slane %v2346, 1
  %v2349 = vor.u32 %v2344, %v2348
  %v2351 = vshrl.u32 %v2331, 16
  %v2353 = vshll.u32 %v2331, 16
  %v2355 = vrot.slane %v2353, 1
  %v2356 = vor.u32 %v2351, %v2355
  %v2358 = vshrl.u32 %v2332, 16
  %v2360 = vshll.u32 %v2332, 16
  %v2362 = vrot.slane %v2360, 1
  %v2363 = vor.u32 %v2358, %v2362
  %v2365 = vshrl.u32 %v2333, 16
  %v2367 = vshll.u32 %v2333, 16
  %v2369 = vrot.slane %v2367, 1
  %v2370 = vor.u32 %v2365, %v2369
  %v2372 = vshrl.u32 %v2334, 16
  %v2374 = vshll.u32 %v2334, 16
  %v2376 = vrot.slane %v2374, 1
  %v2377 = vor.u32 %v2372, %v2376
  %v2379 = vshrl.u32 %v2335, 16
  %v2381 = vshll.u32 %v2335, 16
  %v2383 = vrot.slane %v2381, 1
  %v2384 = vor.u32 %v2379, %v2383
  %2385 = vrot.lane.b32.xlu0 %v2349, 64
  %v2386 = vpop.permute.xlu0 %2385
  %2387 = vrot.lane.b32.xlu0 %v2356, 64
  %v2388 = vpop.permute.xlu0 %2387
  %2389 = vrot.lane.b32.xlu0 %v2363, 64
  %v2390 = vpop.permute.xlu0 %2389
  %2391 = vrot.lane.b32.xlu0 %v2370, 64
  %v2392 = vpop.permute.xlu0 %2391
  %2393 = vrot.lane.b32.xlu0 %v2377, 64
  %v2394 = vpop.permute.xlu0 %2393
  %2395 = vrot.lane.b32.xlu0 %v2384, 64
  %v2396 = vpop.permute.xlu0 %2395
  %v2397 = vsel %vm182, %v2386, %v2388
  %v2398 = vsel %vm182, %v2388, %v2390
  %v2399 = vsel %vm182, %v2392, %v2394
  %v2400 = vsel %vm182, %v2394, %v2396
  %v2407 = vrot.slane %v2330, 1
  %v2408 = vrot.slane %v2331, 1
  %v2409 = vrot.slane %v2332, 1
  %v2410 = vrot.slane %v2333, 1
  %v2411 = vrot.slane %v2334, 1
  %v2412 = vrot.slane %v2335, 1
  %v2414 = vsel %vm199, %v2332, %v2386
  %v2416 = vsel %vm199, %v2335, %v2392
  %v2419 = vunpack.c.l.b16 %v2330
  %v2420 = vunpack.c.l.b16 %v2331
  %v2421 = vunpack.c.l.b16 %v2414
  %v2422 = vunpack.c.l.b16 %v2397
  %v2423 = vunpack.c.l.b16 %v2398
  %v2424 = vunpack.c.l.b16 %v2407
  %v2425 = vunpack.c.l.b16 %v2408
  %v2426 = vunpack.c.l.b16 %v2409
  %v2427 = vunpack.c.l.b16 %v2333
  %v2428 = vunpack.c.l.b16 %v2334
  %v2429 = vunpack.c.l.b16 %v2416
  %v2430 = vunpack.c.l.b16 %v2399
  %v2431 = vunpack.c.l.b16 %v2400
  %v2432 = vunpack.c.l.b16 %v2410
  %v2433 = vunpack.c.l.b16 %v2411
  %v2434 = vunpack.c.l.b16 %v2412
  %v2435 = vld [vmem:[%s3] sm:$0xf]
  %v2436 = vld [vmem:[%s3 + $0x4] sm:$0xf]
  %v2437 = vld [vmem:[%s3 + $0x8] sm:$0xf]
  %v2438 = vld [vmem:[%s3 + $0xc] sm:$0xf]
  %v2439 = vld [vmem:[%s3 + $0x10] sm:$0xf]
  %v2440 = vld [vmem:[%s3 + $0x14] sm:$0xf]
  %v2441 = vld [vmem:[%s3 + $0x18] sm:$0xf]
  %v2442 = vld [vmem:[%s3 + $0x1c] sm:$0xf]
  %v2443 = vld [vmem:[%s3 + $0x20] sm:$0xf]
  %v2444 = vld [vmem:[%s3 + $0x24] sm:$0xf]
  %v2445 = vld [vmem:[%s3 + $0x28] sm:$0xf]
  %v2446 = vld [vmem:[%s3 + $0x2c] sm:$0xf]
  %v2447 = vld [vmem:[%s3 + $0x30] sm:$0xf]
  %v2448 = vld [vmem:[%s3 + $0x34] sm:$0xf]
  %v2449 = vld [vmem:[%s3 + $0x38] sm:$0xf]
  %v2450 = vld [vmem:[%s3 + $0x3c] sm:$0xf]
  %v2451 = vld [vmem:[%s3 + $0x40] sm:$0xf]
  %v2452 = vld [vmem:[%s3 + $0x44] sm:$0xf]
  %v2453 = vld [vmem:[%s3 + $0x48] sm:$0xf]
  %v2454 = vld [vmem:[%s3 + $0x4c] sm:$0xf]
  %v2455 = vld [vmem:[%s3 + $0x50] sm:$0xf]
  %v2456 = vld [vmem:[%s3 + $0x54] sm:$0xf]
  %v2457 = vld [vmem:[%s3 + $0x58] sm:$0xf]
  %v2458 = vld [vmem:[%s3 + $0x5c] sm:$0xf]
  %v2459 = vld [vmem:[%s3 + $0x60] sm:$0xf]
  %v2460 = vld [vmem:[%s3 + $0x64] sm:$0xf]
  %v2461 = vld [vmem:[%s3 + $0x68] sm:$0xf]
  %v2462 = vld [vmem:[%s3 + $0x6c] sm:$0xf]
  %v2463 = vld [vmem:[%s3 + $0x70] sm:$0xf]
  %v2464 = vld [vmem:[%s3 + $0x74] sm:$0xf]
  %v2465 = vld [vmem:[%s3 + $0x78] sm:$0xf]
  %v2466 = vld [vmem:[%s3 + $0x7c] sm:$0xf]
  %v2467 = vld [vmem:[%s3 + $0x80] sm:$0xf]
  %v2468 = vld [vmem:[%s3 + $0x84] sm:$0xf]
  %v2469 = vld [vmem:[%s3 + $0x88] sm:$0xf]
  %v2470 = vld [vmem:[%s3 + $0x8c] sm:$0xf]
  %v2471 = vld [vmem:[%s3 + $0x90] sm:$0xf]
  %v2472 = vld [vmem:[%s3 + $0x94] sm:$0xf]
  %v2473 = vld [vmem:[%s3 + $0x98] sm:$0xf]
  %v2474 = vld [vmem:[%s3 + $0x9c] sm:$0xf]
  %v2475 = vld [vmem:[%s3 + $0xa0] sm:$0xf]
  %v2476 = vld [vmem:[%s3 + $0xa4] sm:$0xf]
  %v2477 = vld [vmem:[%s3 + $0xa8] sm:$0xf]
  %v2478 = vld [vmem:[%s3 + $0xac] sm:$0xf]
  %v2479 = vld [vmem:[%s3 + $0xb0] sm:$0xf]
  %v2480 = vld [vmem:[%s3 + $0xb4] sm:$0xf]
  %v2481 = vld [vmem:[%s3 + $0xb8] sm:$0xf]
  %v2482 = vld [vmem:[%s3 + $0xbc] sm:$0xf]
  %v2483 = vld [vmem:[%s3 + $0xc0] sm:$0xf]
  %v2484 = vld [vmem:[%s3 + $0xc4] sm:$0xf]
  %v2485 = vld [vmem:[%s3 + $0xc8] sm:$0xf]
  %v2486 = vld [vmem:[%s3 + $0xcc] sm:$0xf]
  %v2487 = vld [vmem:[%s3 + $0xd0] sm:$0xf]
  %v2488 = vld [vmem:[%s3 + $0xd4] sm:$0xf]
  %v2489 = vld [vmem:[%s3 + $0xd8] sm:$0xf]
  %v2490 = vld [vmem:[%s3 + $0xdc] sm:$0xf]
  %v2491 = vld [vmem:[%s3 + $0xe0] sm:$0xf]
  %v2492 = vld [vmem:[%s3 + $0xe4] sm:$0xf]
  %v2493 = vld [vmem:[%s3 + $0xe8] sm:$0xf]
  %v2494 = vld [vmem:[%s3 + $0xec] sm:$0xf]
  %v2495 = vld [vmem:[%s3 + $0xf0] sm:$0xf]
  %v2496 = vld [vmem:[%s3 + $0xf4] sm:$0xf]
  %v2497 = vld [vmem:[%s3 + $0xf8] sm:$0xf]
  %v2498 = vld [vmem:[%s3 + $0xfc] sm:$0xf]
  %v2499 = vld [vmem:[%s3 + $0x100] sm:$0xf]
  %v2500 = vld [vmem:[%s3 + $0x104] sm:$0xf]
  %v2501 = vld [vmem:[%s3 + $0x108] sm:$0xf]
  %v2502 = vld [vmem:[%s3 + $0x10c] sm:$0xf]
  %v2503 = vld [vmem:[%s3 + $0x110] sm:$0xf]
  %v2504 = vld [vmem:[%s3 + $0x114] sm:$0xf]
  %v2505 = vld [vmem:[%s3 + $0x118] sm:$0xf]
  %v2506 = vld [vmem:[%s3 + $0x11c] sm:$0xf]
  %v2507 = vld [vmem:[%s3 + $0x120] sm:$0xf]
  %v2508 = vld [vmem:[%s3 + $0x124] sm:$0xf]
  %v2509 = vld [vmem:[%s3 + $0x128] sm:$0xf]
  %v2510 = vld [vmem:[%s3 + $0x12c] sm:$0xf]
  %v2511 = vld [vmem:[%s3 + $0x130] sm:$0xf]
  %v2512 = vld [vmem:[%s3 + $0x134] sm:$0xf]
  %v2513 = vld [vmem:[%s3 + $0x138] sm:$0xf]
  %v2514 = vld [vmem:[%s3 + $0x13c] sm:$0xf]
  %v2515 = vld [vmem:[%s3 + $0x140] sm:$0xf]
  %v2516 = vld [vmem:[%s3 + $0x144] sm:$0xf]
  %v2517 = vld [vmem:[%s3 + $0x148] sm:$0xf]
  %v2518 = vld [vmem:[%s3 + $0x14c] sm:$0xf]
  %v2519 = vld [vmem:[%s3 + $0x150] sm:$0xf]
  %v2520 = vld [vmem:[%s3 + $0x154] sm:$0xf]
  %v2521 = vld [vmem:[%s3 + $0x158] sm:$0xf]
  %v2522 = vld [vmem:[%s3 + $0x15c] sm:$0xf]
  %v2523 = vld [vmem:[%s3 + $0x160] sm:$0xf]
  %v2524 = vld [vmem:[%s3 + $0x164] sm:$0xf]
  %v2525 = vld [vmem:[%s3 + $0x168] sm:$0xf]
  %v2526 = vld [vmem:[%s3 + $0x16c] sm:$0xf]
  %v2527 = vld [vmem:[%s3 + $0x170] sm:$0xf]
  %v2528 = vld [vmem:[%s3 + $0x174] sm:$0xf]
  %v2529 = vld [vmem:[%s3 + $0x178] sm:$0xf]
  %v2530 = vld [vmem:[%s3 + $0x17c] sm:$0xf]
  %v2531 = vld [vmem:[%s3 + $0x180] sm:$0xf]
  %v2532 = vld [vmem:[%s3 + $0x184] sm:$0xf]
  %v2533 = vld [vmem:[%s3 + $0x188] sm:$0xf]
  %v2534 = vld [vmem:[%s3 + $0x18c] sm:$0xf]
  %v2535 = vld [vmem:[%s3 + $0x190] sm:$0xf]
  %v2536 = vld [vmem:[%s3 + $0x194] sm:$0xf]
  %v2537 = vld [vmem:[%s3 + $0x198] sm:$0xf]
  %v2538 = vld [vmem:[%s3 + $0x19c] sm:$0xf]
  %v2539 = vld [vmem:[%s3 + $0x1a0] sm:$0xf]
  %v2540 = vld [vmem:[%s3 + $0x1a4] sm:$0xf]
  %v2541 = vld [vmem:[%s3 + $0x1a8] sm:$0xf]
  %v2542 = vld [vmem:[%s3 + $0x1ac] sm:$0xf]
  %v2543 = vld [vmem:[%s3 + $0x1b0] sm:$0xf]
  %v2544 = vld [vmem:[%s3 + $0x1b4] sm:$0xf]
  %v2545 = vld [vmem:[%s3 + $0x1b8] sm:$0xf]
  %v2546 = vld [vmem:[%s3 + $0x1bc] sm:$0xf]
  %v2547 = vld [vmem:[%s3 + $0x1c0] sm:$0xf]
  %v2548 = vld [vmem:[%s3 + $0x1c4] sm:$0xf]
  %v2549 = vld [vmem:[%s3 + $0x1c8] sm:$0xf]
  %v2550 = vld [vmem:[%s3 + $0x1cc] sm:$0xf]
  %v2551 = vld [vmem:[%s3 + $0x1d0] sm:$0xf]
  %v2552 = vld [vmem:[%s3 + $0x1d4] sm:$0xf]
  %v2553 = vld [vmem:[%s3 + $0x1d8] sm:$0xf]
  %v2554 = vld [vmem:[%s3 + $0x1dc] sm:$0xf]
  %v2555 = vpack.c.b16 %v2427, %v2419
  %v2556 = vpack.c.b16 %v2428, %v2420
  %v2557 = vpack.c.b16 %v2429, %v2421
  %v2558 = vpack.c.b16 %v2430, %v2422
  %v2559 = vpack.c.b16 %v2431, %v2423
  %v2560 = vpack.c.b16 %v2432, %v2424
  %v2561 = vpack.c.b16 %v2433, %v2425
  %v2562 = vpack.c.b16 %v2434, %v2426
  %v2690 = vunpack.c.l.b16 %v2435
  %v2691 = vunpack.c.l.b16 %v2436
  %v2692 = vunpack.c.l.b16 %v2437
  %v2693 = vunpack.c.l.b16 %v2438
  %v2694 = vunpack.c.l.b16 %v2439
  %v2695 = vunpack.c.l.b16 %v2440
  %v2696 = vunpack.c.l.b16 %v2441
  %v2697 = vunpack.c.l.b16 %v2442
  %v2698 = vunpack.c.l.b16 %v2443
  %v2699 = vunpack.c.l.b16 %v2444
  %v2700 = vunpack.c.l.b16 %v2445
  %v2701 = vunpack.c.l.b16 %v2446
  %v2702 = vunpack.c.l.b16 %v2447
  %v2703 = vunpack.c.l.b16 %v2448
  %v2704 = vunpack.c.l.b16 %v2449
  %v2705 = vunpack.c.l.b16 %v2450
  %v2706 = vunpack.c.l.b16 %v2451
  %v2707 = vunpack.c.l.b16 %v2452
  %v2708 = vunpack.c.l.b16 %v2453
  %v2709 = vunpack.c.l.b16 %v2454
  %v2710 = vunpack.c.l.b16 %v2455
  %v2711 = vunpack.c.l.b16 %v2456
  %v2712 = vunpack.c.l.b16 %v2457
  %v2713 = vunpack.c.l.b16 %v2458
  %v2714 = vunpack.c.l.b16 %v2459
  %v2715 = vunpack.c.l.b16 %v2460
  %v2716 = vunpack.c.l.b16 %v2461
  %v2717 = vunpack.c.l.b16 %v2462
  %v2718 = vunpack.c.l.b16 %v2463
  %v2719 = vunpack.c.l.b16 %v2464
  %v2720 = vunpack.c.l.b16 %v2465
  %v2721 = vunpack.c.l.b16 %v2466
  %v2722 = vunpack.c.l.b16 %v2467
  %v2723 = vunpack.c.l.b16 %v2468
  %v2724 = vunpack.c.l.b16 %v2469
  %v2725 = vunpack.c.l.b16 %v2470
  %v2726 = vunpack.c.l.b16 %v2471
  %v2727 = vunpack.c.l.b16 %v2472
  %v2728 = vunpack.c.l.b16 %v2473
  %v2729 = vunpack.c.l.b16 %v2474
  %v2730 = vunpack.c.l.b16 %v2475
  %v2731 = vunpack.c.l.b16 %v2476
  %v2732 = vunpack.c.l.b16 %v2477
  %v2733 = vunpack.c.l.b16 %v2478
  %v2734 = vunpack.c.l.b16 %v2479
  %v2735 = vunpack.c.l.b16 %v2480
  %v2736 = vunpack.c.l.b16 %v2481
  %v2737 = vunpack.c.l.b16 %v2482
  %v2738 = vunpack.c.l.b16 %v2483
  %v2739 = vunpack.c.l.b16 %v2484
  %v2740 = vunpack.c.l.b16 %v2485
  %v2741 = vunpack.c.l.b16 %v2486
  %v2742 = vunpack.c.l.b16 %v2487
  %v2743 = vunpack.c.l.b16 %v2488
  %v2744 = vunpack.c.l.b16 %v2489
  %v2745 = vunpack.c.l.b16 %v2490
  %v2746 = vunpack.c.l.b16 %v2491
  %v2747 = vunpack.c.l.b16 %v2492
  %v2748 = vunpack.c.l.b16 %v2493
  %v2749 = vunpack.c.l.b16 %v2494
  %v2750 = vunpack.c.l.b16 %v2495
  %v2751 = vunpack.c.l.b16 %v2496
  %v2752 = vunpack.c.l.b16 %v2497
  %v2753 = vunpack.c.l.b16 %v2498
  %v2754 = vunpack.c.l.b16 %v2499
  %v2755 = vunpack.c.l.b16 %v2500
  %v2756 = vunpack.c.l.b16 %v2501
  %v2757 = vunpack.c.l.b16 %v2502
  %v2758 = vunpack.c.l.b16 %v2503
  %v2759 = vunpack.c.l.b16 %v2504
  %v2760 = vunpack.c.l.b16 %v2505
  %v2761 = vunpack.c.l.b16 %v2506
  %v2762 = vunpack.c.l.b16 %v2507
  %v2763 = vunpack.c.l.b16 %v2508
  %v2764 = vunpack.c.l.b16 %v2509
  %v2765 = vunpack.c.l.b16 %v2510
  %v2766 = vunpack.c.l.b16 %v2511
  %v2767 = vunpack.c.l.b16 %v2512
  %v2768 = vunpack.c.l.b16 %v2513
  %v2769 = vunpack.c.l.b16 %v2514
  %v2770 = vunpack.c.l.b16 %v2515
  %v2771 = vunpack.c.l.b16 %v2516
  %v2772 = vunpack.c.l.b16 %v2517
  %v2773 = vunpack.c.l.b16 %v2518
  %v2774 = vunpack.c.l.b16 %v2519
  %v2775 = vunpack.c.l.b16 %v2520
  %v2776 = vunpack.c.l.b16 %v2521
  %v2777 = vunpack.c.l.b16 %v2522
  %v2778 = vunpack.c.l.b16 %v2523
  %v2779 = vunpack.c.l.b16 %v2524
  %v2780 = vunpack.c.l.b16 %v2525
  %v2781 = vunpack.c.l.b16 %v2526
  %v2782 = vunpack.c.l.b16 %v2527
  %v2783 = vunpack.c.l.b16 %v2528
  %v2784 = vunpack.c.l.b16 %v2529
  %v2785 = vunpack.c.l.b16 %v2530
  %v2786 = vunpack.c.l.b16 %v2531
  %v2787 = vunpack.c.l.b16 %v2532
  %v2788 = vunpack.c.l.b16 %v2533
  %v2789 = vunpack.c.l.b16 %v2534
  %v2790 = vunpack.c.l.b16 %v2535
  %v2791 = vunpack.c.l.b16 %v2536
  %v2792 = vunpack.c.l.b16 %v2537
  %v2793 = vunpack.c.l.b16 %v2538
  %v2794 = vunpack.c.l.b16 %v2539
  %v2795 = vunpack.c.l.b16 %v2540
  %v2796 = vunpack.c.l.b16 %v2541
  %v2797 = vunpack.c.l.b16 %v2542
  %v2798 = vunpack.c.l.b16 %v2543
  %v2799 = vunpack.c.l.b16 %v2544
  %v2800 = vunpack.c.l.b16 %v2545
  %v2801 = vunpack.c.l.b16 %v2546
  %v2802 = vunpack.c.l.b16 %v2547
  %v2803 = vunpack.c.l.b16 %v2548
  %v2804 = vunpack.c.l.b16 %v2549
  %v2805 = vunpack.c.l.b16 %v2550
  %v2806 = vunpack.c.l.b16 %v2551
  %v2807 = vunpack.c.l.b16 %v2552
  %v2808 = vunpack.c.l.b16 %v2553
  %v2809 = vunpack.c.l.b16 %v2554
  %v2810 = vpack.c.b16 %v2691, %v2690
  %v2811 = vpack.c.b16 %v2693, %v2692
  %v2812 = vpack.c.b16 %v2695, %v2694
  %v2813 = vpack.c.b16 %v2697, %v2696
  %v2814 = vpack.c.b16 %v2699, %v2698
  %v2815 = vpack.c.b16 %v2701, %v2700
  %v2816 = vpack.c.b16 %v2703, %v2702
  %v2817 = vpack.c.b16 %v2705, %v2704
  %v2818 = vpack.c.b16 %v2707, %v2706
  %v2819 = vpack.c.b16 %v2709, %v2708
  %v2820 = vpack.c.b16 %v2711, %v2710
  %v2821 = vpack.c.b16 %v2713, %v2712
  %v2822 = vpack.c.b16 %v2715, %v2714
  %v2823 = vpack.c.b16 %v2717, %v2716
  %v2824 = vpack.c.b16 %v2719, %v2718
  %v2825 = vpack.c.b16 %v2721, %v2720
  %v2826 = vpack.c.b16 %v2723, %v2722
  %v2827 = vpack.c.b16 %v2725, %v2724
  %v2828 = vpack.c.b16 %v2727, %v2726
  %v2829 = vpack.c.b16 %v2729, %v2728
  %v2830 = vpack.c.b16 %v2731, %v2730
  %v2831 = vpack.c.b16 %v2733, %v2732
  %v2832 = vpack.c.b16 %v2735, %v2734
  %v2833 = vpack.c.b16 %v2737, %v2736
  %v2834 = vpack.c.b16 %v2739, %v2738
  %v2835 = vpack.c.b16 %v2741, %v2740
  %v2836 = vpack.c.b16 %v2743, %v2742
  %v2837 = vpack.c.b16 %v2745, %v2744
  %v2838 = vpack.c.b16 %v2747, %v2746
  %v2839 = vpack.c.b16 %v2749, %v2748
  %v2840 = vpack.c.b16 %v2751, %v2750
  %v2841 = vpack.c.b16 %v2753, %v2752
  %v2842 = vpack.c.b16 %v2755, %v2754
  %v2843 = vpack.c.b16 %v2757, %v2756
  %v2844 = vpack.c.b16 %v2759, %v2758
  %v2845 = vpack.c.b16 %v2761, %v2760
  %v2846 = vpack.c.b16 %v2763, %v2762
  %v2847 = vpack.c.b16 %v2765, %v2764
  %v2848 = vpack.c.b16 %v2767, %v2766
  %v2849 = vpack.c.b16 %v2769, %v2768
  %v2850 = vpack.c.b16 %v2771, %v2770
  %v2851 = vpack.c.b16 %v2773, %v2772
  %v2852 = vpack.c.b16 %v2775, %v2774
  %v2853 = vpack.c.b16 %v2777, %v2776
  %v2854 = vpack.c.b16 %v2779, %v2778
  %v2855 = vpack.c.b16 %v2781, %v2780
  %v2856 = vpack.c.b16 %v2783, %v2782
  %v2857 = vpack.c.b16 %v2785, %v2784
  %v2858 = vpack.c.b16 %v2787, %v2786
  %v2859 = vpack.c.b16 %v2789, %v2788
  %v2860 = vpack.c.b16 %v2791, %v2790
  %v2861 = vpack.c.b16 %v2793, %v2792
  %v2862 = vpack.c.b16 %v2795, %v2794
  %v2863 = vpack.c.b16 %v2797, %v2796
  %v2864 = vpack.c.b16 %v2799, %v2798
  %v2865 = vpack.c.b16 %v2801, %v2800
  %v2866 = vpack.c.b16 %v2803, %v2802
  %v2867 = vpack.c.b16 %v2805, %v2804
  %v2868 = vpack.c.b16 %v2807, %v2806
  %v2869 = vpack.c.b16 %v2809, %v2808
  %v2931 = vsel %vm199, %v2562, 0
  %2933 = vmatprep.subr.bf16.mxu0 0
  %2934 = vmatpush1.bf16.msra.mxu0 %v2810
  %2935 = vmatprep.subr.bf16.mxu0 0
  %2936 = vmatpush1.bf16.msra.mxu0 %v2811
  %2937 = vmatprep.subr.bf16.mxu0 0
  %2938 = vmatpush1.bf16.msra.mxu0 %v2812
  %2939 = vmatprep.subr.bf16.mxu0 0
  %2940 = vmatpush1.bf16.msra.mxu0 %v2813
  %2941 = vmatprep.subr.bf16.mxu0 0
  %2942 = vmatpush1.bf16.msra.mxu0 %v2814
  %2943 = vmatprep.subr.bf16.mxu0 0
  %2944 = vmatpush1.bf16.msra.mxu0 %v2815
  %2945 = vmatprep.subr.bf16.mxu0 0
  %2946 = vmatpush1.bf16.msra.mxu0 %v2816
  %2947 = vmatprep.subr.bf16.mxu0 0
  %2948 = vmatpush1.bf16.msra.mxu0 %v2817
  %2949 = vmatprep.subr.bf16.mxu0 0
  %2950 = vmatpush1.bf16.msra.mxu0 %v2818
  %2951 = vmatprep.subr.bf16.mxu0 0
  %2952 = vmatpush1.bf16.msra.mxu0 %v2819
  %2953 = vmatprep.subr.bf16.mxu0 0
  %2954 = vmatpush1.bf16.msra.mxu0 %v2820
  %2955 = vmatprep.subr.bf16.mxu0 0
  %2956 = vmatpush1.bf16.msra.mxu0 %v2821
  %2957 = vmatprep.subr.bf16.mxu0 0
  %2958 = vmatpush1.bf16.msra.mxu0 %v2822
  %2959 = vmatprep.subr.bf16.mxu0 0
  %2960 = vmatpush1.bf16.msra.mxu0 %v2823
  %2961 = vmatprep.subr.bf16.mxu0 0
  %2962 = vmatpush1.bf16.msra.mxu0 %v2824
  %2963 = vmatprep.subr.bf16.mxu0 0
  %2964 = vmatpush1.bf16.msra.mxu0 %v2825
  %2965 = vmatprep.mubr.bf16.mxu0 %v2556
  %2966 = vmatmul.mubr.bf16.gmra.mrb[0].mxu0 %v2555
  %v2967 = vpop.f32.mrb[0].mxu0
  %v2968 = vadd.f32 0.0, %v2967
  %v2969 = vpop.f32.mrb[0].mxu0
  %v2970 = vpop.f32.mrb[0].mxu0
  %v2971 = vadd.f32 0.0, %v2970
  %v2972 = vpop.f32.mrb[0].mxu0
  %2973 = vdwg.mxu0
  %2974 = vmatprep.subr.bf16.mxu0 0
  %2975 = vmatpush1.bf16.msra.mxu0 %v2826
  %2976 = vmatprep.subr.bf16.mxu0 0
  %2977 = vmatpush1.bf16.msra.mxu0 %v2827
  %2978 = vmatprep.subr.bf16.mxu0 0
  %2979 = vmatpush1.bf16.msra.mxu0 %v2828
  %2980 = vmatprep.subr.bf16.mxu0 0
  %2981 = vmatpush1.bf16.msra.mxu0 %v2829
  %2982 = vmatprep.subr.bf16.mxu0 0
  %2983 = vmatpush1.bf16.msra.mxu0 %v2830
  %2984 = vmatprep.subr.bf16.mxu0 0
  %2985 = vmatpush1.bf16.msra.mxu0 %v2831
  %2986 = vmatprep.subr.bf16.mxu0 0
  %2987 = vmatpush1.bf16.msra.mxu0 %v2832
  %2988 = vmatprep.subr.bf16.mxu0 0
  %2989 = vmatpush1.bf16.msra.mxu0 %v2833
  %2990 = vmatprep.subr.bf16.mxu0 0
  %2991 = vmatpush1.bf16.msra.mxu0 %v2834
  %2992 = vmatprep.subr.bf16.mxu0 0
  %2993 = vmatpush1.bf16.msra.mxu0 %v2835
  %2994 = vmatprep.subr.bf16.mxu0 0
  %2995 = vmatpush1.bf16.msra.mxu0 %v2836
  %2996 = vmatprep.subr.bf16.mxu0 0
  %2997 = vmatpush1.bf16.msra.mxu0 %v2837
  %2998 = vmatprep.subr.bf16.mxu0 0
  %2999 = vmatpush1.bf16.msra.mxu0 %v2838
  %3000 = vmatprep.subr.bf16.mxu0 0
  %3001 = vmatpush1.bf16.msra.mxu0 %v2839
  %3002 = vmatprep.subr.bf16.mxu0 0
  %3003 = vmatpush1.bf16.msra.mxu0 %v2840
  %3004 = vmatprep.subr.bf16.mxu0 0
  %3005 = vmatpush1.bf16.msra.mxu0 %v2841
  %3006 = vmatprep.mubr.bf16.mxu0 %v2558
  %3007 = vmatmul.mubr.bf16.gmra.mrb[0].mxu0 %v2557
  %v3008 = vpop.f32.mrb[0].mxu0
  %v3009 = vadd.f32 %v2968, %v3008
  %v3010 = vpop.f32.mrb[0].mxu0
  %v3011 = vpop.f32.mrb[0].mxu0
  %v3012 = vadd.f32 %v2971, %v3011
  %v3013 = vpop.f32.mrb[0].mxu0
  %3014 = vdwg.mxu0
  %3015 = vmatprep.subr.bf16.mxu0 0
  %3016 = vmatpush1.bf16.msra.mxu0 %v2842
  %3017 = vmatprep.subr.bf16.mxu0 0
  %3018 = vmatpush1.bf16.msra.mxu0 %v2843
  %3019 = vmatprep.subr.bf16.mxu0 0
  %3020 = vmatpush1.bf16.msra.mxu0 %v2844
  %3021 = vmatprep.subr.bf16.mxu0 0
  %3022 = vmatpush1.bf16.msra.mxu0 %v2845
  %3023 = vmatprep.subr.bf16.mxu0 0
  %3024 = vmatpush1.bf16.msra.mxu0 %v2846
  %3025 = vmatprep.subr.bf16.mxu0 0
  %3026 = vmatpush1.bf16.msra.mxu0 %v2847
  %3027 = vmatprep.subr.bf16.mxu0 0
  %3028 = vmatpush1.bf16.msra.mxu0 %v2848
  %3029 = vmatprep.subr.bf16.mxu0 0
  %3030 = vmatpush1.bf16.msra.mxu0 %v2849
  %3031 = vmatprep.subr.bf16.mxu0 0
  %3032 = vmatpush1.bf16.msra.mxu0 %v2850
  %3033 = vmatprep.subr.bf16.mxu0 0
  %3034 = vmatpush1.bf16.msra.mxu0 %v2851
  %3035 = vmatprep.subr.bf16.mxu0 0
  %3036 = vmatpush1.bf16.msra.mxu0 %v2852
  %3037 = vmatprep.subr.bf16.mxu0 0
  %3038 = vmatpush1.bf16.msra.mxu0 %v2853
  %3039 = vmatprep.subr.bf16.mxu0 0
  %3040 = vmatpush1.bf16.msra.mxu0 %v2854
  %3041 = vmatprep.subr.bf16.mxu0 0
  %3042 = vmatpush1.bf16.msra.mxu0 %v2855
  %3043 = vmatprep.subr.bf16.mxu0 0
  %3044 = vmatpush1.bf16.msra.mxu0 %v2856
  %3045 = vmatprep.subr.bf16.mxu0 0
  %3046 = vmatpush1.bf16.msra.mxu0 %v2857
  %3047 = vmatprep.mubr.bf16.mxu0 %v2560
  %3048 = vmatmul.mubr.bf16.gmra.mrb[0].mxu0 %v2559
  %v3049 = vpop.f32.mrb[0].mxu0
  %v3050 = vadd.f32 %v3009, %v3049
  %v3051 = vpop.f32.mrb[0].mxu0
  %v3052 = vpop.f32.mrb[0].mxu0
  %v3053 = vadd.f32 %v3012, %v3052
  %v3054 = vpop.f32.mrb[0].mxu0
  %3055 = vdwg.mxu0
  %3056 = vmatprep.subr.bf16.mxu0 0
  %3057 = vmatpush1.bf16.msra.mxu0 %v2858
  %3058 = vmatprep.subr.bf16.mxu0 0
  %3059 = vmatpush1.bf16.msra.mxu0 %v2859
  %3060 = vmatprep.subr.bf16.mxu0 0
  %3061 = vmatpush1.bf16.msra.mxu0 %v2860
  %3062 = vmatprep.subr.bf16.mxu0 0
  %3063 = vmatpush1.bf16.msra.mxu0 %v2861
  %3064 = vmatprep.subr.bf16.mxu0 0
  %3065 = vmatpush1.bf16.msra.mxu0 %v2862
  %3066 = vmatprep.subr.bf16.mxu0 0
  %3067 = vmatpush1.bf16.msra.mxu0 %v2863
  %3068 = vmatprep.subr.bf16.mxu0 0
  %3069 = vmatpush1.bf16.msra.mxu0 %v2864
  %3070 = vmatprep.subr.bf16.mxu0 0
  %3071 = vmatpush1.bf16.msra.mxu0 %v2865
  %3072 = vmatprep.subr.bf16.mxu0 0
  %3073 = vmatpush1.bf16.msra.mxu0 %v2866
  %3074 = vmatprep.subr.bf16.mxu0 0
  %3075 = vmatpush1.bf16.msra.mxu0 %v2867
  %3076 = vmatprep.subr.bf16.mxu0 0
  %3077 = vmatpush1.bf16.msra.mxu0 %v2868
  %3078 = vmatprep.subr.bf16.mxu0 0
  %3079 = vmatpush1.bf16.msra.mxu0 %v2869
  %3080 = vmatprep.subr.bf16.mxu0 0
  %3081 = vmatpush1.bf16.msra.mxu0 0
  %3082 = vmatprep.subr.bf16.mxu0 0
  %3083 = vmatpush1.bf16.msra.mxu0 0
  %3084 = vmatprep.subr.bf16.mxu0 0
  %3085 = vmatpush1.bf16.msra.mxu0 0
  %3086 = vmatprep.subr.bf16.mxu0 0
  %3087 = vmatpush1.bf16.msra.mxu0 0
  %3088 = vmatprep.mubr.bf16.mxu0 %v2931
  %3089 = vmatmul.mubr.bf16.gmra.mrb[0].mxu0 %v2561
  %v3090 = vpop.f32.mrb[0].mxu0
  %v3091 = vadd.f32 %v3050, %v3090
  %v3092 = vpop.f32.mrb[0].mxu0
  %v3093 = vpop.f32.mrb[0].mxu0
  %v3094 = vadd.f32 %v3053, %v3093
  %v3095 = vpop.f32.mrb[0].mxu0
  %3096 = vdwg.mxu0
  %v3097 = vadd.f32 %v2341, %v3091
  %v3098 = vadd.f32 %v2341, %v3094
  %3099 = vst [vmem:[%s5] sm:$0xff] %v3097
  %3100 = vst [vmem:[%s5 + $0x8] sm:$0xff] %v3098
  // Predicated region
  $region22: #{regressor_head_forward.1} parent=0 // pred_check
    _
  $region23: #{regressor_head_forward.1} parent=0 // pred_check_branch
    %3102 = sbr.rel (0) target = $region25
  $region24: #{regressor_head_forward.1} parent=0 // pred_region
    _
  $region25: #{regressor_head_forward.1} parent=0 // pred_fallthru
    _
  // Predicated region
  $region26: #{regressor_head_forward.1} parent=0 // pred_check
    _
  $region27: #{regressor_head_forward.1} parent=0 // pred_check_branch
    %3104 = sbr.rel (0) target = $region29
  $region28: #{regressor_head_forward.1} parent=0 // pred_region
    _
  $region29: #{regressor_head_forward.1} parent=0 // pred_fallthru
    _

</llo_original>
